<compile_context>
chip_gen: v7x
topology: tpu7x:2x2x1
jax: 0.10.0
libtpu: 0.0.40
codegen_flags: <defaults>
</compile_context>

<pallas_src>
import functools
import math

import jax
import jax.numpy as jnp
from jax import lax
from jax.experimental import pallas as pl
from jax.experimental.pallas import tpu as pltpu


HALO = 8  # halo rows fetched after each tile (sublane aligned); needs KH-1 <= 8


def _round_up(a, b):
    return ((a + b - 1) // b) * b


def _vmem_budget_bytes():
    """~3/4 of this generation's VMEM (64 MiB fallback), capped at 96 MiB."""
    try:
        cap = int(pltpu.get_tpu_info().vmem_capacity_bytes)
    except Exception:
        cap = 64 * 1024 * 1024
    return min(cap * 3 // 4, 96 * 1024 * 1024)


def ws_conv_kernel(xm_ref, xh_ref, w_ref, b_ref, o_ref, *, kh, kw, th, wpad):
    """One (image, row-tile) grid step.

    xm_ref: (1, Cin, TH, Wpad)     main rows of the padded input (compute dtype)
    xh_ref: (1, Cin, HALO, Wpad)   the HALO rows immediately after them
    w_ref : (KH*KW, Cout, Cin)     WS-scaled weights, tap-major
    b_ref : (Cout, 1)              bias (f32)
    o_ref : (1, 1, Cout, TH*Wpad)  flattened, lane-dense output block
    """
    cin = xm_ref.shape[1]
    halo = xh_ref.shape[2]
    span = th * wpad

    # Rows [h*TH, h*TH + TH + HALO) of the padded image, flattened once per
    # tile (the only relayout in the kernel, ~1x the input tile).
    xf = jnp.concatenate([xm_ref[0], xh_ref[0]], axis=1)   # (Cin, TH+HALO, Wpad)
    xflat = xf.reshape(cin, (th + halo) * wpad)

    # KH*KW accumulating matmuls on shifted views; no im2col concatenate.
    # Columns c = r*Wpad + wo with wo >= Wout pick up row-spill garbage; the
    # wrapper slices them (and rows >= Hout) off, so every kept element is
    # exact.
    acc = None
    for i in range(kh):
        for j in range(kw):
            off = i * wpad + j
            tap = xflat[:, off:off + span] if off else xflat[:, :span]
            part = jnp.dot(w_ref[i * kw + j], tap,
                           preferred_element_type=jnp.float32)  # (Cout, span)
            acc = part if acc is None else acc + part
    acc = acc + b_ref[...]                                  # bias once per tile
    o_ref[0, 0] = acc.astype(o_ref.dtype)


def ws_conv2d(x, weight, bias, *, padding=1, row_tile=128,
              compute_dtype=jnp.bfloat16):
    """WS-wrapped Conv2d forward.  x: (N, Cin, H, W) NCHW; returns NCHW."""
    N, Cin, H, W = x.shape
    Cout, Cin2, KH, KW = weight.shape
    assert Cin2 == Cin
    assert KH - 1 <= HALO  # TODO(synk): enlarge the halo block for KH > 9
    scale = math.sqrt(2.0 / (Cin * KH * KW))

    Hout = H + 2 * padding - KH + 1
    Wout = W + 2 * padding - KW + 1
    Wpad = W + 2 * padding

    c_item = jnp.dtype(compute_dtype).itemsize
    o_item = jnp.dtype(x.dtype).itemsize
    budget = _vmem_budget_bytes()

    def vmem_bytes(th):
        in_blocks = 2 * Cin * (th + HALO) * Wpad * c_item      # double-buffered
        out_blocks = 2 * Cout * th * Wpad * o_item             # double-buffered
        live = (Cin * (th + HALO) * Wpad + Cin * th * Wpad) * c_item  # xflat+tap
        acc = Cout * th * Wpad * 4                             # f32 accumulator
        wgt = 2 * (KH * KW * Cout * Cin * c_item + Cout * 4)
        return in_blocks + out_blocks + live + acc + wgt

    # Row tile: whole image for small H; clamp so the working set fits the
    # per-generation VMEM budget (matters on v7x's 64 MiB).
    TH = _round_up(min(row_tile, _round_up(Hout, 8)), 8)
    while TH > 8 and vmem_bytes(TH) > budget:
        TH = _round_up(TH // 2, 8)
    num_h = pl.cdiv(Hout, TH)
    Hout_ext = num_h * TH
    Hpad_ext = Hout_ext + HALO        # only the halo rows past the last tile
    span = TH * Wpad

    # The single full-tensor HBM op outside the kernel: cast to the compute
    # dtype + zero-pad (fused by XLA); no layout transposes.
    # TODO(synk): replace this pad pass with in-kernel boundary masking.
    x_pad = jnp.pad(
        x.astype(compute_dtype),
        ((0, 0), (0, 0),
         (padding, Hpad_ext - padding - H),
         (padding, padding)))

    # Fold the WS scale into the (tiny) weights; tap-major (i, j) layout.
    w_taps = weight.astype(jnp.float32) * scale
    w_taps = jnp.transpose(w_taps, (2, 3, 0, 1)).reshape(KH * KW, Cout, Cin)
    w_taps = w_taps.astype(compute_dtype)
    b2 = bias.reshape(Cout, 1).astype(jnp.float32)

    kernel = functools.partial(ws_conv_kernel, kh=KH, kw=KW, th=TH, wpad=Wpad)

    out = pl.pallas_call(
        kernel,
        out_shape=jax.ShapeDtypeStruct((N, num_h, Cout, span), x.dtype),
        grid=(N, num_h),
        in_specs=[
            # main TH rows of this tile
            pl.BlockSpec((1, Cin, TH, Wpad), lambda n, h: (n, 0, h, 0)),
            # halo: the HALO rows immediately after them (2nd view, same array)
            pl.BlockSpec((1, Cin, HALO, Wpad),
                         lambda n, h: (n, 0, (h + 1) * (TH // HALO), 0)),
            # weights & bias: fully resident, grid-invariant
            pl.BlockSpec((KH * KW, Cout, Cin), lambda n, h: (0, 0, 0)),
            pl.BlockSpec((Cout, 1), lambda n, h: (0, 0)),
        ],
        out_specs=pl.BlockSpec((1, 1, Cout, span), lambda n, h: (n, h, 0, 0)),
        compiler_params=pltpu.CompilerParams(
            dimension_semantics=("parallel", "parallel"),
            vmem_limit_bytes=budget,
        ),
    )(x_pad, x_pad, w_taps, b2)

    # Undo the flattened layout in the wrapper (XLA): rows back under H, then
    # drop the Wpad-Wout spill columns and the Hout_ext-Hout extra rows.
    out = out.reshape(N, num_h, Cout, TH, Wpad)
    out = jnp.transpose(out, (0, 2, 1, 3, 4)).reshape(N, Cout, Hout_ext, Wpad)
    return out[:, :, :Hout, :Wout]


def ws_conv2d_reference(x_nchw, weight, bias, *, padding=1):
    """Pure-JAX reference (mirrors PyTorch F.conv2d(x*scale, W) + bias)."""
    Cin = x_nchw.shape[1]
    KH, KW = weight.shape[2], weight.shape[3]
    scale = math.sqrt(2.0 / (Cin * KH * KW))
    y = lax.conv_general_dilated(
        x_nchw * scale, weight,
        window_strides=(1, 1),
        padding=((padding, padding), (padding, padding)),
        dimension_numbers=("NCHW", "OIHW", "NCHW"),
    )
    return y + bias.reshape(1, -1, 1, 1)


if __name__ == "__main__":
    key = jax.random.PRNGKey(0)
    kx, kw_ = jax.random.split(key)

    N, Cin, H, W = 2, 4, 16, 16
    Cout, K = 8, 3

    x = jax.random.normal(kx, (N, Cin, H, W), dtype=jnp.float32)
    # WS.__init__: nn.init.normal_(weight) -> standard normal; bias -> zeros.
    weight = jax.random.normal(kw_, (Cout, Cin, K, K), dtype=jnp.float32)
    bias = jnp.zeros((Cout,), dtype=jnp.float32)

    ref = ws_conv2d_reference(x, weight, bias, padding=1)

    # Exact f32 path with small row tiles -> grid (2, 2): exercises the halo
    # view and the wrapper's multi-tile row reassembly.  Tight tolerance.
    out_f32 = jax.block_until_ready(
        ws_conv2d(x, weight, bias, padding=1, row_tile=8,
                  compute_dtype=jnp.float32))
    assert out_f32.shape == (N, Cout, H, W), out_f32.shape
    assert jnp.allclose(out_f32, ref, atol=1e-4, rtol=1e-4), float(
        jnp.max(jnp.abs(out_f32 - ref)))

    # Default path: bf16 input DMA / MXU inputs, f32 accumulation, whole image
    # per grid step (grid (2, 1) keeps both v7x TensorCores busy).
    out_bf16 = jax.block_until_ready(ws_conv2d(x, weight, bias, padding=1))
    assert out_bf16.shape == (N, Cout, H, W), out_bf16.shape
    assert jnp.allclose(out_bf16, ref, atol=1e-1, rtol=5e-2), float(
        jnp.max(jnp.abs(out_bf16 - ref)))

    print("KERNEL_OK")
</pallas_src>

<mosaic_0001>
module attributes {stable_mosaic.version = 11 : i64} {
  func.func @ws_conv_kernel(%arg0: i32, %arg1: i32, %arg2: memref<1x4x8x18xf32, #tpu.memory_space<vmem>>, %arg3: memref<1x4x8x18xf32, #tpu.memory_space<vmem>>, %arg4: memref<9x8x4xf32, #tpu.memory_space<vmem>>, %arg5: memref<8x1xf32, #tpu.memory_space<vmem>>, %arg6: memref<1x1x8x144xf32, #tpu.memory_space<vmem>>) attributes {dimension_semantics = [#tpu.dimension_semantics<parallel>, #tpu.dimension_semantics<parallel>], iteration_bounds = array<i64: 2, 2>, scalar_prefetch = 0 : i64, scratch_operands = 0 : i64, tpu.core_type = #tpu.core_type<tc>, window_params = [{transform_indices = @transform_0, window_bounds = array<i64: 1, 4, 8, 18>}, {transform_indices = @transform_1, window_bounds = array<i64: 1, 4, 8, 18>}, {pipeline_mode = #tpu.pipeline_mode<synchronous>, transform_indices = @transform_2, window_bounds = array<i64: 9, 8, 4>}, {pipeline_mode = #tpu.pipeline_mode<synchronous>, transform_indices = @transform_3, window_bounds = array<i64: 8, 1>}, {transform_indices = @transform_4, window_bounds = array<i64: 1, 1, 8, 144>}]} {
    %c0 = arith.constant 0 : index
    %c0_0 = arith.constant 0 : index
    %c0_1 = arith.constant 0 : index
    %c0_2 = arith.constant 0 : index
    %0 = vector.load %arg2[%c0, %c0_0, %c0_1, %c0_2] : memref<1x4x8x18xf32, #tpu.memory_space<vmem>>, vector<1x4x8x18xf32>
    %1 = vector.shape_cast %0 : vector<1x4x8x18xf32> to vector<4x8x18xf32>
    %c0_3 = arith.constant 0 : index
    %c0_4 = arith.constant 0 : index
    %c0_5 = arith.constant 0 : index
    %c0_6 = arith.constant 0 : index
    %2 = vector.load %arg3[%c0_3, %c0_4, %c0_5, %c0_6] : memref<1x4x8x18xf32, #tpu.memory_space<vmem>>, vector<1x4x8x18xf32>
    %3 = vector.shape_cast %2 : vector<1x4x8x18xf32> to vector<4x8x18xf32>
    %4 = tpu.concatenate %1, %3 in 1 : vector<4x8x18xf32>, vector<4x8x18xf32> -> vector<4x16x18xf32>
    %5 = vector.shape_cast %4 : vector<4x16x18xf32> to vector<4x288xf32>
    %6 = vector.extract_strided_slice %5 {offsets = [0, 0], sizes = [4, 144], strides = [1, 1]} : vector<4x288xf32> to vector<4x144xf32>
    %c0_7 = arith.constant 0 : index
    %c0_8 = arith.constant 0 : index
    %c0_9 = arith.constant 0 : index
    %7 = vector.load %arg4[%c0_7, %c0_8, %c0_9] : memref<9x8x4xf32, #tpu.memory_space<vmem>>, vector<1x8x4xf32>
    %8 = vector.shape_cast %7 : vector<1x8x4xf32> to vector<8x4xf32>
    %cst = arith.constant dense<0.000000e+00> : vector<8x144xf32>
    %9 = tpu.matmul %8, %6, %cst {dimension_numbers = #tpu.dot_dimension_numbers<[1], [0], [0], [1], [0, 0, 1, 1], [], []>} : vector<8x4xf32>, vector<4x144xf32>, vector<8x144xf32> -> vector<8x144xf32>
    %10 = vector.extract_strided_slice %5 {offsets = [0, 1], sizes = [4, 144], strides = [1, 1]} : vector<4x288xf32> to vector<4x144xf32>
    %c1 = arith.constant 1 : index
    %c0_10 = arith.constant 0 : index
    %c0_11 = arith.constant 0 : index
    %11 = vector.load %arg4[%c1, %c0_10, %c0_11] : memref<9x8x4xf32, #tpu.memory_space<vmem>>, vector<1x8x4xf32>
    %12 = vector.shape_cast %11 : vector<1x8x4xf32> to vector<8x4xf32>
    %cst_12 = arith.constant dense<0.000000e+00> : vector<8x144xf32>
    %13 = tpu.matmul %12, %10, %cst_12 {dimension_numbers = #tpu.dot_dimension_numbers<[1], [0], [0], [1], [0, 0, 1, 1], [], []>} : vector<8x4xf32>, vector<4x144xf32>, vector<8x144xf32> -> vector<8x144xf32>
    %14 = arith.addf %9, %13 : vector<8x144xf32>
    %15 = vector.extract_strided_slice %5 {offsets = [0, 2], sizes = [4, 144], strides = [1, 1]} : vector<4x288xf32> to vector<4x144xf32>
    %c2 = arith.constant 2 : index
    %c0_13 = arith.constant 0 : index
    %c0_14 = arith.constant 0 : index
    %16 = vector.load %arg4[%c2, %c0_13, %c0_14] : memref<9x8x4xf32, #tpu.memory_space<vmem>>, vector<1x8x4xf32>
    %17 = vector.shape_cast %16 : vector<1x8x4xf32> to vector<8x4xf32>
    %cst_15 = arith.constant dense<0.000000e+00> : vector<8x144xf32>
    %18 = tpu.matmul %17, %15, %cst_15 {dimension_numbers = #tpu.dot_dimension_numbers<[1], [0], [0], [1], [0, 0, 1, 1], [], []>} : vector<8x4xf32>, vector<4x144xf32>, vector<8x144xf32> -> vector<8x144xf32>
    %19 = arith.addf %14, %18 : vector<8x144xf32>
    %20 = vector.extract_strided_slice %5 {offsets = [0, 18], sizes = [4, 144], strides = [1, 1]} : vector<4x288xf32> to vector<4x144xf32>
    %c3 = arith.constant 3 : index
    %c0_16 = arith.constant 0 : index
    %c0_17 = arith.constant 0 : index
    %21 = vector.load %arg4[%c3, %c0_16, %c0_17] : memref<9x8x4xf32, #tpu.memory_space<vmem>>, vector<1x8x4xf32>
    %22 = vector.shape_cast %21 : vector<1x8x4xf32> to vector<8x4xf32>
    %cst_18 = arith.constant dense<0.000000e+00> : vector<8x144xf32>
    %23 = tpu.matmul %22, %20, %cst_18 {dimension_numbers = #tpu.dot_dimension_numbers<[1], [0], [0], [1], [0, 0, 1, 1], [], []>} : vector<8x4xf32>, vector<4x144xf32>, vector<8x144xf32> -> vector<8x144xf32>
    %24 = arith.addf %19, %23 : vector<8x144xf32>
    %25 = vector.extract_strided_slice %5 {offsets = [0, 19], sizes = [4, 144], strides = [1, 1]} : vector<4x288xf32> to vector<4x144xf32>
    %c4 = arith.constant 4 : index
    %c0_19 = arith.constant 0 : index
    %c0_20 = arith.constant 0 : index
    %26 = vector.load %arg4[%c4, %c0_19, %c0_20] : memref<9x8x4xf32, #tpu.memory_space<vmem>>, vector<1x8x4xf32>
    %27 = vector.shape_cast %26 : vector<1x8x4xf32> to vector<8x4xf32>
    %cst_21 = arith.constant dense<0.000000e+00> : vector<8x144xf32>
    %28 = tpu.matmul %27, %25, %cst_21 {dimension_numbers = #tpu.dot_dimension_numbers<[1], [0], [0], [1], [0, 0, 1, 1], [], []>} : vector<8x4xf32>, vector<4x144xf32>, vector<8x144xf32> -> vector<8x144xf32>
    %29 = arith.addf %24, %28 : vector<8x144xf32>
    %30 = vector.extract_strided_slice %5 {offsets = [0, 20], sizes = [4, 144], strides = [1, 1]} : vector<4x288xf32> to vector<4x144xf32>
    %c5 = arith.constant 5 : index
    %c0_22 = arith.constant 0 : index
    %c0_23 = arith.constant 0 : index
    %31 = vector.load %arg4[%c5, %c0_22, %c0_23] : memref<9x8x4xf32, #tpu.memory_space<vmem>>, vector<1x8x4xf32>
    %32 = vector.shape_cast %31 : vector<1x8x4xf32> to vector<8x4xf32>
    %cst_24 = arith.constant dense<0.000000e+00> : vector<8x144xf32>
    %33 = tpu.matmul %32, %30, %cst_24 {dimension_numbers = #tpu.dot_dimension_numbers<[1], [0], [0], [1], [0, 0, 1, 1], [], []>} : vector<8x4xf32>, vector<4x144xf32>, vector<8x144xf32> -> vector<8x144xf32>
    %34 = arith.addf %29, %33 : vector<8x144xf32>
    %35 = vector.extract_strided_slice %5 {offsets = [0, 36], sizes = [4, 144], strides = [1, 1]} : vector<4x288xf32> to vector<4x144xf32>
    %c6 = arith.constant 6 : index
    %c0_25 = arith.constant 0 : index
    %c0_26 = arith.constant 0 : index
    %36 = vector.load %arg4[%c6, %c0_25, %c0_26] : memref<9x8x4xf32, #tpu.memory_space<vmem>>, vector<1x8x4xf32>
    %37 = vector.shape_cast %36 : vector<1x8x4xf32> to vector<8x4xf32>
    %cst_27 = arith.constant dense<0.000000e+00> : vector<8x144xf32>
    %38 = tpu.matmul %37, %35, %cst_27 {dimension_numbers = #tpu.dot_dimension_numbers<[1], [0], [0], [1], [0, 0, 1, 1], [], []>} : vector<8x4xf32>, vector<4x144xf32>, vector<8x144xf32> -> vector<8x144xf32>
    %39 = arith.addf %34, %38 : vector<8x144xf32>
    %40 = vector.extract_strided_slice %5 {offsets = [0, 37], sizes = [4, 144], strides = [1, 1]} : vector<4x288xf32> to vector<4x144xf32>
    %c7 = arith.constant 7 : index
    %c0_28 = arith.constant 0 : index
    %c0_29 = arith.constant 0 : index
    %41 = vector.load %arg4[%c7, %c0_28, %c0_29] : memref<9x8x4xf32, #tpu.memory_space<vmem>>, vector<1x8x4xf32>
    %42 = vector.shape_cast %41 : vector<1x8x4xf32> to vector<8x4xf32>
    %cst_30 = arith.constant dense<0.000000e+00> : vector<8x144xf32>
    %43 = tpu.matmul %42, %40, %cst_30 {dimension_numbers = #tpu.dot_dimension_numbers<[1], [0], [0], [1], [0, 0, 1, 1], [], []>} : vector<8x4xf32>, vector<4x144xf32>, vector<8x144xf32> -> vector<8x144xf32>
    %44 = arith.addf %39, %43 : vector<8x144xf32>
    %45 = vector.extract_strided_slice %5 {offsets = [0, 38], sizes = [4, 144], strides = [1, 1]} : vector<4x288xf32> to vector<4x144xf32>
    %c8 = arith.constant 8 : index
    %c0_31 = arith.constant 0 : index
    %c0_32 = arith.constant 0 : index
    %46 = vector.load %arg4[%c8, %c0_31, %c0_32] : memref<9x8x4xf32, #tpu.memory_space<vmem>>, vector<1x8x4xf32>
    %47 = vector.shape_cast %46 : vector<1x8x4xf32> to vector<8x4xf32>
    %cst_33 = arith.constant dense<0.000000e+00> : vector<8x144xf32>
    %48 = tpu.matmul %47, %45, %cst_33 {dimension_numbers = #tpu.dot_dimension_numbers<[1], [0], [0], [1], [0, 0, 1, 1], [], []>} : vector<8x4xf32>, vector<4x144xf32>, vector<8x144xf32> -> vector<8x144xf32>
    %49 = arith.addf %44, %48 : vector<8x144xf32>
    %c0_34 = arith.constant 0 : index
    %c0_35 = arith.constant 0 : index
    %50 = vector.load %arg5[%c0_34, %c0_35] : memref<8x1xf32, #tpu.memory_space<vmem>>, vector<8x1xf32>
    %51 = vector.broadcast %50 : vector<8x1xf32> to vector<8x144xf32>
    %52 = arith.addf %49, %51 : vector<8x144xf32>
    %c0_36 = arith.constant 0 : index
    %c0_37 = arith.constant 0 : index
    %c0_38 = arith.constant 0 : index
    %c0_39 = arith.constant 0 : index
    %53 = vector.load %arg6[%c0_36, %c0_37, %c0_38, %c0_39] : memref<1x1x8x144xf32, #tpu.memory_space<vmem>>, vector<1x1x8x144xf32>
    %54 = vector.shape_cast %53 : vector<1x1x8x144xf32> to vector<8x144xf32>
    %55 = vector.shape_cast %52 : vector<8x144xf32> to vector<1x1x8x144xf32>
    tpu.vector_store %arg6[%c0_36, %c0_37, %c0_38, %c0_39], %55 {strides = array<i32>} : memref<1x1x8x144xf32, #tpu.memory_space<vmem>>, vector<1x1x8x144xf32>,
    return
  }
  func.func @transform_0(%arg0: i32, %arg1: i32) -> (i32, i32, i32, i32) {
    %c0_i32 = arith.constant 0 : i32
    %c0_i32_0 = arith.constant 0 : i32
    %c0_i32_1 = arith.constant 0 : i32
    return %arg0, %c0_i32, %arg1, %c0_i32_0 : i32, i32, i32, i32
  }
  func.func @transform_1(%arg0: i32, %arg1: i32) -> (i32, i32, i32, i32) {
    %c1_i32 = arith.constant 1 : i32
    %0 = arith.addi %arg1, %c1_i32 : i32
    %c1_i32_0 = arith.constant 1 : i32
    %1 = arith.muli %0, %c1_i32_0 : i32
    %c0_i32 = arith.constant 0 : i32
    %c0_i32_1 = arith.constant 0 : i32
    %c0_i32_2 = arith.constant 0 : i32
    return %arg0, %c0_i32, %1, %c0_i32_1 : i32, i32, i32, i32
  }
  func.func @transform_2(%arg0: i32, %arg1: i32) -> (i32, i32, i32) {
    %c0_i32 = arith.constant 0 : i32
    %c0_i32_0 = arith.constant 0 : i32
    %c0_i32_1 = arith.constant 0 : i32
    %c0_i32_2 = arith.constant 0 : i32
    return %c0_i32, %c0_i32_0, %c0_i32_1 : i32, i32, i32
  }
  func.func @transform_3(%arg0: i32, %arg1: i32) -> (i32, i32) {
    %c0_i32 = arith.constant 0 : i32
    %c0_i32_0 = arith.constant 0 : i32
    %c0_i32_1 = arith.constant 0 : i32
    return %c0_i32, %c0_i32_0 : i32, i32
  }
  func.func @transform_4(%arg0: i32, %arg1: i32) -> (i32, i32, i32, i32) {
    %c0_i32 = arith.constant 0 : i32
    %c0_i32_0 = arith.constant 0 : i32
    %c0_i32_1 = arith.constant 0 : i32
    return %arg0, %arg1, %c0_i32, %c0_i32_0 : i32, i32, i32, i32
  }
}

</mosaic_0001>

<llo_original>
// kernel: tpu_custom_call.1
$region0: #{tpu_custom_call.1}
  #allocation0 [shape = 'u32[]', space=smem, size = 0x4, offset = 0x4, fixed_abs, tag = 'smem constant byte address 0x4 - core index']
  #allocation1 [shape = 'u32[144,128]{1,0:T(1,128)}', space=vmem, size = 0x12000, scoped, tag = 'internal scratch']
  %s0 = inlined_call_operand.vmem [shape: f32[2,4,24,18], index: 0, kind: input, shape index: {}]
  %s1 = inlined_call_operand.vmem [shape: f32[2,4,24,18], index: 1, kind: input, shape index: {}]
  %s2 = inlined_call_operand.vmem [shape: f32[9,8,4], index: 2, kind: input, shape index: {}]
  %s3 = inlined_call_operand.vmem [shape: f32[8,1], index: 3, kind: input, shape index: {}]
  %s4 = inlined_call_operand.hbm [shape: f32[2,2,8,144], index: 4, kind: output, shape index: {}]
  %s5 = sld [smem:[#allocation0]]
  $region125: #{tpu_custom_call.1} parent=0
    _
  %s7 = ssub.s32 1, %s5
  %s8 = scalar_select 0, %s7, %s5
  $region1: #{tpu_custom_call.1} parent=0
    #allocation2 [shape = 'u8[32768]{0}', space=vmem, size = 0x8000, scoped, tag = 'input window, operand 0']
    #allocation3 [shape = 'u8[32768]{0}', space=vmem, size = 0x8000, scoped, tag = 'input window, operand 1']
    #allocation4 [shape = 'u8[16384]{0}', space=vmem, size = 0x4000, scoped, tag = 'output window, operand 0']
    #allocation5 [shape = 's32[2]{0}', space=sflag, size = 0x8, scoped, tag = 'scoped memory for tpu_custom_call.1']
    %9 = vsyncpa [#allocation5], 0
    %s10 = scalar_lea.sflag [#allocation5], 1
    %11 = vsyncpa %s10, 0
    loop: start=0, step=1, limit=6
    $region2: #{tpu_custom_call.1} parent=1 // loop_pre_header
      _
    $region3: #{tpu_custom_call.1} parent=1 // loop_header
      %s13 = sphi 0, %s17
      %p14 = scmp.ge.s32.totalorder %s13, 6
      %s20 = sphi 0, %s32
      %s21 = sphi 0, %s28
      %s22 = sphi 0, %s20
      %s23 = sphi 0, %s21
      %s24 = sphi 0, %s22
      %s25 = sphi 0, %s23
      %s37 = sphi 0, %s39
      %s40 = sphi 0, %s37
      %s41 = sphi 0, %s40
      %s57 = sphi 0, %s41
      %s67 = sphi 0, %s69
      %s70 = sphi 0, %s67
      %s71 = sphi 0, %s70
      %s87 = sphi 0, %s71
      %s91 = sphi 0, %s91
      %s93 = sphi 0, %s91
      %s94 = sphi 0, %s93
      %s108 = sphi 0, %s94
      %s112 = sphi 0, %s112
      %s114 = sphi 0, %s112
      %s115 = sphi 0, %s114
      %s129 = sphi 0, %s115
      %s137 = sphi 0, %s139
      %s140 = sphi 0, %s137
      %s141 = sphi 0, %s140
      %s157 = sphi 0, %s141
    $region4: #{tpu_custom_call.1} parent=1 // loop_header_branch
      %16 = sbr.rel (%p14) target = $region8
    $region5: #{tpu_custom_call.1} parent=1 // loop_body
      %s18 = ssub.s32 %s13, 1
      %s19 = ssub.s32 %s13, 2
      %s26 = sadd.s32 1, %s21
      %p27 = scmp.ge.s32.totalorder %s26, 2
      %s28 = scalar_select %p27, 0, %s26
      %s29 = sadd.s32 1, %s20
      %s30 = scalar_select %p27, %s29, %s20
      %p31 = scmp.ge.s32.totalorder %s30, 2
      %s32 = scalar_select %p31, 0, %s30
      %s33 = ssub.s32 %s20, %s32
      %s34 = ssub.s32 %s21, %s28
      %s35 = sor.u32 %s33, %s34
      %p36 = scmp.eq.s32.totalorder %s35, 0
      %s38 = sadd.s32 %s37, 1
      %s39 = scalar_select %p36, %s37, %s38
      %p42 = pneg %p36
      %p43 = scmp.eq.s32.totalorder %s13, 3
      %p44 = por %p42, %p43
      %p45 = scmp.ne.s32.totalorder %s37, %s40
      %p46 = scmp.eq.s32.totalorder %s13, 0
      %p47 = por %p45, %p46
      %p48 = scmp.ne.s32.totalorder %s37, %s40
      %p49 = scmp.eq.s32.totalorder %s18, 3
      %p50 = por %p48, %p49
      %p51 = scmp.ne.s32.totalorder %s40, %s41
      %p52 = scmp.eq.s32.totalorder %s18, 0
      %p53 = por %p51, %p52
      %p54 = scmp.ne.s32.totalorder %s40, %s41
      %p55 = scmp.eq.s32.totalorder %s19, 3
      %p56 = por %p54, %p55
      %p58 = scmp.ne.s32.totalorder %s41, %s57
      %p59 = scmp.eq.s32.totalorder %s19, 0
      %p60 = por %p58, %p59
      %s61 = sadd.s32 %s21, 1
      %s62 = sadd.s32 %s28, 1
      %s63 = ssub.s32 %s20, %s32
      %s64 = ssub.s32 %s61, %s62
      %s65 = sor.u32 %s63, %s64
      %p66 = scmp.eq.s32.totalorder %s65, 0
      %s68 = sadd.s32 %s67, 1
      %s69 = scalar_select %p66, %s67, %s68
      %p72 = pneg %p66
      %p73 = scmp.eq.s32.totalorder %s13, 3
      %p74 = por %p72, %p73
      %p75 = scmp.ne.s32.totalorder %s67, %s70
      %p76 = scmp.eq.s32.totalorder %s13, 0
      %p77 = por %p75, %p76
      %p78 = scmp.ne.s32.totalorder %s67, %s70
      %p79 = scmp.eq.s32.totalorder %s18, 3
      %p80 = por %p78, %p79
      %p81 = scmp.ne.s32.totalorder %s70, %s71
      %p82 = scmp.eq.s32.totalorder %s18, 0
      %p83 = por %p81, %p82
      %p84 = scmp.ne.s32.totalorder %s70, %s71
      %p85 = scmp.eq.s32.totalorder %s19, 3
      %p86 = por %p84, %p85
      %p88 = scmp.ne.s32.totalorder %s71, %s87
      %p89 = scmp.eq.s32.totalorder %s19, 0
      %p90 = por %p88, %p89
      %s92 = sadd.s32 %s91, 1
      %p95 = scmp.eq.s32.totalorder %s13, 3
      %p96 = scmp.ne.s32.totalorder %s91, %s93
      %p97 = scmp.eq.s32.totalorder %s13, 0
      %p98 = por %p96, %p97
      %p99 = scmp.ne.s32.totalorder %s91, %s93
      %p100 = scmp.eq.s32.totalorder %s18, 3
      %p101 = por %p99, %p100
      %p102 = scmp.ne.s32.totalorder %s93, %s94
      %p103 = scmp.eq.s32.totalorder %s18, 0
      %p104 = por %p102, %p103
      %p105 = scmp.ne.s32.totalorder %s93, %s94
      %p106 = scmp.eq.s32.totalorder %s19, 3
      %p107 = por %p105, %p106
      %p109 = scmp.ne.s32.totalorder %s94, %s108
      %p110 = scmp.eq.s32.totalorder %s19, 0
      %p111 = por %p109, %p110
      %s113 = sadd.s32 %s112, 1
      %p116 = scmp.eq.s32.totalorder %s13, 3
      %p117 = scmp.ne.s32.totalorder %s112, %s114
      %p118 = scmp.eq.s32.totalorder %s13, 0
      %p119 = por %p117, %p118
      %p120 = scmp.ne.s32.totalorder %s112, %s114
      %p121 = scmp.eq.s32.totalorder %s18, 3
      %p122 = por %p120, %p121
      %p123 = scmp.ne.s32.totalorder %s114, %s115
      %p124 = scmp.eq.s32.totalorder %s18, 0
      %p125 = por %p123, %p124
      %p126 = scmp.ne.s32.totalorder %s114, %s115
      %p127 = scmp.eq.s32.totalorder %s19, 3
      %p128 = por %p126, %p127
      %p130 = scmp.ne.s32.totalorder %s115, %s129
      %p131 = scmp.eq.s32.totalorder %s19, 0
      %p132 = por %p130, %p131
      %s133 = ssub.s32 %s20, %s32
      %s134 = ssub.s32 %s21, %s28
      %s135 = sor.u32 %s133, %s134
      %p136 = scmp.eq.s32.totalorder %s135, 0
      %s138 = sadd.s32 %s137, 1
      %s139 = scalar_select %p136, %s137, %s138
      %p142 = pneg %p136
      %p143 = scmp.eq.s32.totalorder %s13, 3
      %p144 = por %p142, %p143
      %p145 = scmp.ne.s32.totalorder %s137, %s140
      %p146 = scmp.eq.s32.totalorder %s13, 0
      %p147 = por %p145, %p146
      %p148 = scmp.ne.s32.totalorder %s137, %s140
      %p149 = scmp.eq.s32.totalorder %s18, 3
      %p150 = por %p148, %p149
      %p151 = scmp.ne.s32.totalorder %s140, %s141
      %p152 = scmp.eq.s32.totalorder %s18, 0
      %p153 = por %p151, %p152
      %p154 = scmp.ne.s32.totalorder %s140, %s141
      %p155 = scmp.eq.s32.totalorder %s19, 3
      %p156 = por %p154, %p155
      %p158 = scmp.ne.s32.totalorder %s141, %s157
      %p159 = scmp.eq.s32.totalorder %s19, 0
      %p160 = por %p158, %p159
      %p161 = scmp.le.s32.totalorder 1, %s13
      %p162 = scmp.lt.s32.totalorder %s13, 5
      %p163 = pnand %p161, %p162
      %p164 = pneg %p163
      // Predicated region
      $region9: #{tpu_custom_call.1} parent=5 // pred_check
        _
      $region10: #{tpu_custom_call.1} parent=5 // pred_check_branch
        %166 = sbr.rel (%p163) target = $region12
      $region11: #{tpu_custom_call.1} parent=5 // pred_region
        %s167 = ssub.s32 %s13, 1
        // Predicated region
        $region13: #{tpu_custom_call.1} parent=11 // pred_check
          %p168 = pneg %p104
        $region14: #{tpu_custom_call.1} parent=11 // pred_check_branch
          %170 = sbr.rel (%p168) target = $region16
        $region15: #{tpu_custom_call.1} parent=11 // pred_region
          _
        $region16: #{tpu_custom_call.1} parent=11 // pred_fallthru
          _
        // Predicated region
        $region17: #{tpu_custom_call.1} parent=11 // pred_check
          %p171 = pneg %p125
        $region18: #{tpu_custom_call.1} parent=11 // pred_check_branch
          %173 = sbr.rel (%p171) target = $region20
        $region19: #{tpu_custom_call.1} parent=11 // pred_region
          _
        $region20: #{tpu_custom_call.1} parent=11 // pred_fallthru
          _
      $region12: #{tpu_custom_call.1} parent=5 // pred_fallthru
        _
      %p174 = scmp.lt.s32.totalorder %s13, 4
      // Predicated region
      $region21: #{tpu_custom_call.1} parent=5 // pred_check
        %p175 = pneg %p174
      $region22: #{tpu_custom_call.1} parent=5 // pred_check_branch
        %177 = sbr.rel (%p175) target = $region24
      $region23: #{tpu_custom_call.1} parent=5 // pred_region
        // Predicated region
        $region25: #{tpu_custom_call.1} parent=23 // pred_check
          %p178 = pneg %p47
        $region26: #{tpu_custom_call.1} parent=23 // pred_check_branch
          %180 = sbr.rel (%p178) target = $region28
        $region27: #{tpu_custom_call.1} parent=23 // pred_region
          %s181 = sand.u32 %s37, 1
          %s182 = sand.u32 %s37, 1
          %s183 = smul.addr %s182, 32
          %s184 = scalar_lea.vmem [#allocation2], %s183
          %s185 = smul.addr %s20, 12
          %s186 = sadd.s32 %s21, %s185
          %s187 = smul.addr %s186, 8
          %s188 = scalar_lea.vmem %s0, %s187
          // Predicated region
          $region29: #{tpu_custom_call.1} parent=27 // pred_check
            _
          $region30: #{tpu_custom_call.1} parent=27 // pred_check_branch
            %190 = sbr.rel (0) target = $region32
          $region31: #{tpu_custom_call.1} parent=27 // pred_region
            // Predicated region
            $region33: #{tpu_custom_call.1} parent=31 // pred_check
              _
            $region34: #{tpu_custom_call.1} parent=31 // pred_check_branch
              %192 = sbr.rel (0) target = $region36
            $region35: #{tpu_custom_call.1} parent=31 // pred_region
              // Predicated region
              $region48: #{tpu_custom_call.1} parent=35 // pred_check
                _
              $region49: #{tpu_custom_call.1} parent=35 // pred_check_branch
                %213 = sbr.rel (0) target = $region51
              $region50: #{tpu_custom_call.1} parent=35 // pred_region
                loop: start=0, step=1, limit=1
                $region52: #{tpu_custom_call.1} parent=50 // loop_pre_header
                  _
                $region53: #{tpu_custom_call.1} parent=50 // loop_header
                  %s215 = sphi 0, %s219
                  %p216 = scmp.ge.s32.totalorder %s215, 1
                  %s220 = sphi %s188, %s188
                  %s221 = sphi %s184, %s184
                $region54: #{tpu_custom_call.1} parent=50 // loop_header_branch
                  %218 = sbr.rel (%p216) target = $region58
                $region55: #{tpu_custom_call.1} parent=50 // loop_body
                  %v222 = vld [vmem:[%s220] sm:$0xff]
                  %223 = vst [vmem:[%s221] sm:$0xff] %v222
                  %v224 = vld [vmem:[%s220 + $0x18] sm:$0xff]
                  %225 = vst [vmem:[%s221 + $0x8] sm:$0xff] %v224
                  %v226 = vld [vmem:[%s220 + $0x30] sm:$0xff]
                  %227 = vst [vmem:[%s221 + $0x10] sm:$0xff] %v226
                  %v228 = vld [vmem:[%s220 + $0x48] sm:$0xff]
                  %229 = vst [vmem:[%s221 + $0x18] sm:$0xff] %v228
                $region56: #{tpu_custom_call.1} parent=50 // loop_footer
                  %s219 = sadd.s32 1, %s215
                $region57: #{tpu_custom_call.1} parent=50 // loop_footer_branch
                  %214 = sbr.rel target = $region53
                $region58: #{tpu_custom_call.1} parent=50 // loop_exit
                  _
              $region51: #{tpu_custom_call.1} parent=35 // pred_fallthru
                _
              // Predicated region
              $region59: #{tpu_custom_call.1} parent=35 // pred_check
                _
              $region60: #{tpu_custom_call.1} parent=35 // pred_check_branch
                %231 = sbr.rel target = $region62
              $region61: #{tpu_custom_call.1} parent=35 // pred_region
                _
              $region62: #{tpu_custom_call.1} parent=35 // pred_fallthru
                _
            $region36: #{tpu_custom_call.1} parent=31 // pred_fallthru
              _
            // Predicated region
            $region37: #{tpu_custom_call.1} parent=31 // pred_check
              _
            $region38: #{tpu_custom_call.1} parent=31 // pred_check_branch
              %194 = sbr.rel target = $region40
            $region39: #{tpu_custom_call.1} parent=31 // pred_region
              loop: start=0, step=1, limit=1
              $region41: #{tpu_custom_call.1} parent=39 // loop_pre_header
                _
              $region42: #{tpu_custom_call.1} parent=39 // loop_header
                %s197 = sphi 0, %s201
                %p198 = scmp.ge.s32.totalorder %s197, 1
                %s202 = sphi %s188, %s188
                %s203 = sphi %s184, %s184
              $region43: #{tpu_custom_call.1} parent=39 // loop_header_branch
                %200 = sbr.rel (%p198) target = $region47
              $region44: #{tpu_custom_call.1} parent=39 // loop_body
                %v204 = vld [vmem:[%s202] sm:$0xff]
                %205 = vst [vmem:[%s203] sm:$0xff] %v204
                %v206 = vld [vmem:[%s202 + $0x18] sm:$0xff]
                %207 = vst [vmem:[%s203 + $0x8] sm:$0xff] %v206
                %v208 = vld [vmem:[%s202 + $0x30] sm:$0xff]
                %209 = vst [vmem:[%s203 + $0x10] sm:$0xff] %v208
                %v210 = vld [vmem:[%s202 + $0x48] sm:$0xff]
                %211 = vst [vmem:[%s203 + $0x18] sm:$0xff] %v210
              $region45: #{tpu_custom_call.1} parent=39 // loop_footer
                %s201 = sadd.s32 1, %s197
              $region46: #{tpu_custom_call.1} parent=39 // loop_footer_branch
                %196 = sbr.rel target = $region42
              $region47: #{tpu_custom_call.1} parent=39 // loop_exit
                _
            $region40: #{tpu_custom_call.1} parent=31 // pred_fallthru
              _
          $region32: #{tpu_custom_call.1} parent=27 // pred_fallthru
            _
          %232 = vnop
        $region28: #{tpu_custom_call.1} parent=23 // pred_fallthru
          _
        // Predicated region
        $region63: #{tpu_custom_call.1} parent=23 // pred_check
          %p233 = pneg %p77
        $region64: #{tpu_custom_call.1} parent=23 // pred_check_branch
          %235 = sbr.rel (%p233) target = $region66
        $region65: #{tpu_custom_call.1} parent=23 // pred_region
          %s236 = sand.u32 %s67, 1
          %s237 = sand.u32 %s67, 1
          %s238 = smul.addr %s237, 32
          %s239 = scalar_lea.vmem [#allocation3], %s238
          %s240 = sadd.s32 %s21, 1
          %s241 = smul.addr %s20, 12
          %s242 = sadd.s32 %s240, %s241
          %s243 = smul.addr %s242, 8
          %s244 = scalar_lea.vmem %s1, %s243
          // Predicated region
          $region67: #{tpu_custom_call.1} parent=65 // pred_check
            _
          $region68: #{tpu_custom_call.1} parent=65 // pred_check_branch
            %246 = sbr.rel (0) target = $region70
          $region69: #{tpu_custom_call.1} parent=65 // pred_region
            // Predicated region
            $region71: #{tpu_custom_call.1} parent=69 // pred_check
              _
            $region72: #{tpu_custom_call.1} parent=69 // pred_check_branch
              %248 = sbr.rel (0) target = $region74
            $region73: #{tpu_custom_call.1} parent=69 // pred_region
              // Predicated region
              $region86: #{tpu_custom_call.1} parent=73 // pred_check
                _
              $region87: #{tpu_custom_call.1} parent=73 // pred_check_branch
                %269 = sbr.rel (0) target = $region89
              $region88: #{tpu_custom_call.1} parent=73 // pred_region
                loop: start=0, step=1, limit=1
                $region90: #{tpu_custom_call.1} parent=88 // loop_pre_header
                  _
                $region91: #{tpu_custom_call.1} parent=88 // loop_header
                  %s271 = sphi 0, %s275
                  %p272 = scmp.ge.s32.totalorder %s271, 1
                  %s276 = sphi %s244, %s244
                  %s277 = sphi %s239, %s239
                $region92: #{tpu_custom_call.1} parent=88 // loop_header_branch
                  %274 = sbr.rel (%p272) target = $region96
                $region93: #{tpu_custom_call.1} parent=88 // loop_body
                  %v278 = vld [vmem:[%s276] sm:$0xff]
                  %279 = vst [vmem:[%s277] sm:$0xff] %v278
                  %v280 = vld [vmem:[%s276 + $0x18] sm:$0xff]
                  %281 = vst [vmem:[%s277 + $0x8] sm:$0xff] %v280
                  %v282 = vld [vmem:[%s276 + $0x30] sm:$0xff]
                  %283 = vst [vmem:[%s277 + $0x10] sm:$0xff] %v282
                  %v284 = vld [vmem:[%s276 + $0x48] sm:$0xff]
                  %285 = vst [vmem:[%s277 + $0x18] sm:$0xff] %v284
                $region94: #{tpu_custom_call.1} parent=88 // loop_footer
                  %s275 = sadd.s32 1, %s271
                $region95: #{tpu_custom_call.1} parent=88 // loop_footer_branch
                  %270 = sbr.rel target = $region91
                $region96: #{tpu_custom_call.1} parent=88 // loop_exit
                  _
              $region89: #{tpu_custom_call.1} parent=73 // pred_fallthru
                _
              // Predicated region
              $region97: #{tpu_custom_call.1} parent=73 // pred_check
                _
              $region98: #{tpu_custom_call.1} parent=73 // pred_check_branch
                %287 = sbr.rel target = $region100
              $region99: #{tpu_custom_call.1} parent=73 // pred_region
                _
              $region100: #{tpu_custom_call.1} parent=73 // pred_fallthru
                _
            $region74: #{tpu_custom_call.1} parent=69 // pred_fallthru
              _
            // Predicated region
            $region75: #{tpu_custom_call.1} parent=69 // pred_check
              _
            $region76: #{tpu_custom_call.1} parent=69 // pred_check_branch
              %250 = sbr.rel target = $region78
            $region77: #{tpu_custom_call.1} parent=69 // pred_region
              loop: start=0, step=1, limit=1
              $region79: #{tpu_custom_call.1} parent=77 // loop_pre_header
                _
              $region80: #{tpu_custom_call.1} parent=77 // loop_header
                %s253 = sphi 0, %s257
                %p254 = scmp.ge.s32.totalorder %s253, 1
                %s258 = sphi %s244, %s244
                %s259 = sphi %s239, %s239
              $region81: #{tpu_custom_call.1} parent=77 // loop_header_branch
                %256 = sbr.rel (%p254) target = $region85
              $region82: #{tpu_custom_call.1} parent=77 // loop_body
                %v260 = vld [vmem:[%s258] sm:$0xff]
                %261 = vst [vmem:[%s259] sm:$0xff] %v260
                %v262 = vld [vmem:[%s258 + $0x18] sm:$0xff]
                %263 = vst [vmem:[%s259 + $0x8] sm:$0xff] %v262
                %v264 = vld [vmem:[%s258 + $0x30] sm:$0xff]
                %265 = vst [vmem:[%s259 + $0x10] sm:$0xff] %v264
                %v266 = vld [vmem:[%s258 + $0x48] sm:$0xff]
                %267 = vst [vmem:[%s259 + $0x18] sm:$0xff] %v266
              $region83: #{tpu_custom_call.1} parent=77 // loop_footer
                %s257 = sadd.s32 1, %s253
              $region84: #{tpu_custom_call.1} parent=77 // loop_footer_branch
                %252 = sbr.rel target = $region80
              $region85: #{tpu_custom_call.1} parent=77 // loop_exit
                _
            $region78: #{tpu_custom_call.1} parent=69 // pred_fallthru
              _
          $region70: #{tpu_custom_call.1} parent=65 // pred_fallthru
            _
          %288 = vnop
        $region66: #{tpu_custom_call.1} parent=23 // pred_fallthru
          _
      $region24: #{tpu_custom_call.1} parent=5 // pred_fallthru
        _
      %p289 = scmp.le.s32.totalorder 1, %s13
      %p290 = scmp.lt.s32.totalorder %s13, 5
      %p291 = pnand %p289, %p290
      %p292 = pneg %p291
      // Predicated region
      $region101: #{tpu_custom_call.1} parent=5 // pred_check
        _
      $region102: #{tpu_custom_call.1} parent=5 // pred_check_branch
        %294 = sbr.rel (%p291) target = $region104
      $region103: #{tpu_custom_call.1} parent=5 // pred_region
        %s295 = ssub.s32 %s13, 1
        %s296 = sand.u32 %s40, 1
        %s297 = sand.u32 %s40, 1
        %s298 = smul.addr %s297, 32
        %s299 = scalar_lea.vmem [#allocation2], %s298
        // Predicated region
        $region105: #{tpu_custom_call.1} parent=103 // pred_check
          %p300 = pneg %p53
        $region106: #{tpu_custom_call.1} parent=103 // pred_check_branch
          %302 = sbr.rel (%p300) target = $region108
        $region107: #{tpu_custom_call.1} parent=103 // pred_region
          _
        $region108: #{tpu_custom_call.1} parent=103 // pred_fallthru
          _
        %s303 = sand.u32 %s70, 1
        %s304 = sand.u32 %s70, 1
        %s305 = smul.addr %s304, 32
        %s306 = scalar_lea.vmem [#allocation3], %s305
        // Predicated region
        $region109: #{tpu_custom_call.1} parent=103 // pred_check
          %p307 = pneg %p83
        $region110: #{tpu_custom_call.1} parent=103 // pred_check_branch
          %309 = sbr.rel (%p307) target = $region112
        $region111: #{tpu_custom_call.1} parent=103 // pred_region
          _
        $region112: #{tpu_custom_call.1} parent=103 // pred_fallthru
          _
        %s310 = sand.u32 %s40, 1
        %s311 = sand.u32 %s40, 1
        %s312 = smul.addr %s311, 32
        %s313 = scalar_lea.vmem [#allocation2], %s312
        %p314 = pneg %p53
        %p315 = pneg %p50
        %s316 = sand.u32 %s70, 1
        %s317 = sand.u32 %s70, 1
        %s318 = smul.addr %s317, 32
        %s319 = scalar_lea.vmem [#allocation3], %s318
        %p320 = pneg %p83
        %p321 = pneg %p80
        %p322 = pneg %p104
        %p323 = pneg %p101
        %p324 = pneg %p125
        %p325 = pneg %p122
        %p326 = pneg %p153
        %p327 = pneg %p150
        %s328 = sand.u32 %s140, 1
        %s329 = scalar_lea.sflag [#allocation5], %s328
        %s330 = sand.u32 %s140, 1
        %s331 = smul.addr %s330, 16
        %s332 = scalar_lea.vmem [#allocation4], %s331
        %s333 = sadd.s32 %s23, 1
        %v334 = vld [vmem:[%s299] sm:$0xff]
        %v335 = vld [vmem:[%s299 + $0x8] sm:$0xff]
        %v336 = vld [vmem:[%s299 + $0x10] sm:$0xff]
        %v337 = vld [vmem:[%s299 + $0x18] sm:$0xff]
        %v338 = vld [vmem:[%s306] sm:$0xff]
        %v339 = vld [vmem:[%s306 + $0x8] sm:$0xff]
        %v340 = vld [vmem:[%s306 + $0x10] sm:$0xff]
        %v341 = vld [vmem:[%s306 + $0x18] sm:$0xff]
        %v342 = vcombine.low %v334, %v336
        %v343 = vcombine.high %v334, %v336
        %v345 = vunpack.c.l.s4 1983009808
        %v346 = vunpack.c.0.s8 %v345
        %v347 = vlaneseq
        %v348 = vshrl.u32 %v347, 7
        %v349 = vsub.s32 %v346, %v348
        %v350 = vrot.slane %v342, %v349
        %v352 = vunpack.c.l.s4 1983009808
        %v353 = vunpack.c.0.s8 %v352
        %v354 = vlaneseq
        %v355 = vshrl.u32 %v354, 7
        %v356 = vsub.s32 %v353, %v355
        %v357 = vrot.slane %v343, %v356
        %v358 = vcombine.low %v335, %v337
        %v359 = vcombine.high %v335, %v337
        %v361 = vunpack.c.l.s4 1983009808
        %v362 = vunpack.c.0.s8 %v361
        %v363 = vlaneseq
        %v364 = vshrl.u32 %v363, 7
        %v365 = vsub.s32 %v362, %v364
        %v366 = vrot.slane %v358, %v365
        %v368 = vunpack.c.l.s4 1983009808
        %v369 = vunpack.c.0.s8 %v368
        %v370 = vlaneseq
        %v371 = vshrl.u32 %v370, 7
        %v372 = vsub.s32 %v369, %v371
        %v373 = vrot.slane %v359, %v372
        %v374 = vcombine.low %v350, %v366
        %v375 = vcombine.high %v350, %v366
        %v377 = vunpack.c.l.s4 1934713408
        %v378 = vunpack.c.0.s8 %v377
        %v379 = vlaneseq
        %v380 = vshrl.u32 %v379, 7
        %v381 = vsub.s32 %v378, %v380
        %v382 = vrot.slane %v374, %v381
        %v384 = vunpack.c.l.s4 1934713408
        %v385 = vunpack.c.0.s8 %v384
        %v386 = vlaneseq
        %v387 = vshrl.u32 %v386, 7
        %v388 = vsub.s32 %v385, %v387
        %v389 = vrot.slane %v375, %v388
        %v390 = vcombine.low %v357, %v373
        %v391 = vcombine.high %v357, %v373
        %v393 = vunpack.c.l.s4 1934713408
        %v394 = vunpack.c.0.s8 %v393
        %v395 = vlaneseq
        %v396 = vshrl.u32 %v395, 7
        %v397 = vsub.s32 %v394, %v396
        %v398 = vrot.slane %v390, %v397
        %v400 = vunpack.c.l.s4 1934713408
        %v401 = vunpack.c.0.s8 %v400
        %v402 = vlaneseq
        %v403 = vshrl.u32 %v402, 7
        %v404 = vsub.s32 %v401, %v403
        %v405 = vrot.slane %v391, %v404
        %v406 = vcombine.high %v382, 0.0
        %v407 = vcombine.high %v389, 0.0
        %v408 = vcombine.high %v398, 0.0
        %v409 = vcombine.high %v405, 0.0
        %v410 = vcombine.low %v338, %v340
        %v411 = vcombine.high %v338, %v340
        %v413 = vunpack.c.l.s4 1983009808
        %v414 = vunpack.c.0.s8 %v413
        %v415 = vlaneseq
        %v416 = vshrl.u32 %v415, 7
        %v417 = vsub.s32 %v414, %v416
        %v418 = vrot.slane %v410, %v417
        %v420 = vunpack.c.l.s4 1983009808
        %v421 = vunpack.c.0.s8 %v420
        %v422 = vlaneseq
        %v423 = vshrl.u32 %v422, 7
        %v424 = vsub.s32 %v421, %v423
        %v425 = vrot.slane %v411, %v424
        %v426 = vcombine.low %v339, %v341
        %v427 = vcombine.high %v339, %v341
        %v429 = vunpack.c.l.s4 1983009808
        %v430 = vunpack.c.0.s8 %v429
        %v431 = vlaneseq
        %v432 = vshrl.u32 %v431, 7
        %v433 = vsub.s32 %v430, %v432
        %v434 = vrot.slane %v426, %v433
        %v436 = vunpack.c.l.s4 1983009808
        %v437 = vunpack.c.0.s8 %v436
        %v438 = vlaneseq
        %v439 = vshrl.u32 %v438, 7
        %v440 = vsub.s32 %v437, %v439
        %v441 = vrot.slane %v427, %v440
        %v442 = vcombine.low %v418, %v434
        %v443 = vcombine.high %v418, %v434
        %v445 = vunpack.c.l.s4 1934713408
        %v446 = vunpack.c.0.s8 %v445
        %v447 = vlaneseq
        %v448 = vshrl.u32 %v447, 7
        %v449 = vsub.s32 %v446, %v448
        %v450 = vrot.slane %v442, %v449
        %v452 = vunpack.c.l.s4 1934713408
        %v453 = vunpack.c.0.s8 %v452
        %v454 = vlaneseq
        %v455 = vshrl.u32 %v454, 7
        %v456 = vsub.s32 %v453, %v455
        %v457 = vrot.slane %v443, %v456
        %v458 = vcombine.low %v425, %v441
        %v459 = vcombine.high %v425, %v441
        %v461 = vunpack.c.l.s4 1934713408
        %v462 = vunpack.c.0.s8 %v461
        %v463 = vlaneseq
        %v464 = vshrl.u32 %v463, 7
        %v465 = vsub.s32 %v462, %v464
        %v466 = vrot.slane %v458, %v465
        %v467 = vcombine.high %v450, 0.0
        %v468 = vcombine.high %v457, 0.0
        %v469 = vcombine.high %v466, 0.0
        %v471 = vunpack.c.l.s4 1934713408
        %v472 = vunpack.c.0.s8 %v471
        %v473 = vlaneseq
        %v474 = vshrl.u32 %v473, 7
        %v475 = vsub.s32 %v472, %v474
        %v476 = vrot.slane %v459, %v475
        %478 = vrot.lane.b32.xlu0 %v406, 18
        %v479 = vpop.permute.xlu0 %478
        %482 = vrot.lane.b32.xlu0 %v389, 36
        %v483 = vpop.permute.xlu0 %482
        %486 = vrot.lane.b32.xlu0 %v407, 54
        %v487 = vpop.permute.xlu0 %486
        %490 = vrot.lane.b32.xlu0 %v398, 72
        %v491 = vpop.permute.xlu0 %490
        %494 = vrot.lane.b32.xlu0 %v408, 90
        %v495 = vpop.permute.xlu0 %494
        %498 = vrot.lane.b32.xlu0 %v405, 108
        %v499 = vpop.permute.xlu0 %498
        %502 = vrot.lane.b32.xlu0 %v409, 126
        %v503 = vpop.permute.xlu0 %502
        %506 = vrot.lane.b32.xlu0 %v450, 16
        %v507 = vpop.permute.xlu0 %506
        %510 = vrot.lane.b32.xlu0 %v467, 34
        %v511 = vpop.permute.xlu0 %510
        %514 = vrot.lane.b32.xlu0 %v457, 52
        %v515 = vpop.permute.xlu0 %514
        %518 = vrot.lane.b32.xlu0 %v468, 70
        %v519 = vpop.permute.xlu0 %518
        %522 = vrot.lane.b32.xlu0 %v466, 88
        %v523 = vpop.permute.xlu0 %522
        %526 = vrot.lane.b32.xlu0 %v469, 106
        %v527 = vpop.permute.xlu0 %526
        %530 = vrot.lane.b32.xlu0 %v476, 124
        %v531 = vpop.permute.xlu0 %530
        %vm533 = vcmask 146432
        %v534 = vsel %vm533, %v382, %v479
        %vm535 = vcmask 293888
        %v536 = vsel %vm535, %v534, %v483
        %vm537 = vcmask 441344
        %v538 = vsel %vm537, %v536, %v487
        %vm539 = vcmask 588800
        %v540 = vsel %vm539, %v538, %v491
        %vm541 = vcmask 736256
        %v542 = vsel %vm541, %v540, %v495
        %vm543 = vcmask 883712
        %v544 = vsel %vm543, %v542, %v499
        %vm545 = vcmask 1031168
        %v546 = vsel %vm545, %v544, %v503
        %vm547 = vcmask 130048
        %v548 = vsel %vm547, %v503, %v507
        %vm549 = vcmask 277504
        %v550 = vsel %vm549, %v548, %v511
        %vm551 = vcmask 424960
        %v552 = vsel %vm551, %v550, %v515
        %vm553 = vcmask 572416
        %v554 = vsel %vm553, %v552, %v519
        %vm555 = vcmask 719872
        %v556 = vsel %vm555, %v554, %v523
        %vm557 = vcmask 867328
        %v558 = vsel %vm557, %v556, %v527
        %vm559 = vcmask 1014784
        %v560 = vsel %vm559, %v558, %v531
        %v561 = vld [vmem:[%s2] sm:$0xff]
        %s562 = scalar_lea.vmem %s2, 8
        %v563 = vld [vmem:[%s562] sm:$0xff]
        %566 = vrot.lane.b32.xlu0 %v546, 127
        %v567 = vpop.permute.xlu0 %566
        %568 = vrot.lane.b32.xlu0 %v560, 127
        %v569 = vpop.permute.xlu0 %568
        %vm570 = vcmask 1039360
        %v571 = vsel %vm570, %v567, %v569
        %vm572 = vcmask 31744
        %v574 = vsel %vm572, %v563, 0
        %vm576 = vcmask 1043456
        %v577 = vsel %vm576, %v571, 0
        %v579 = vsel %vm576, %v569, 0
        %581 = vmatprep.subr.mxu0 %v579
        %582 = vmatpush1.msra.mxu0 %v577
        %583 = vmatprep.subr.mxu0 0.0
        %584 = vmatpush1.msra.mxu0 0.0
        %585 = vmatprep.subr.mxu0 0.0
        %586 = vmatpush1.msra.mxu0 0.0
        %587 = vmatprep.subr.mxu0 0.0
        %588 = vmatpush1.msra.mxu0 0.0
        %589 = vmatprep.subr.mxu0 0.0
        %590 = vmatpush1.msra.mxu0 0.0
        %591 = vmatprep.subr.mxu0 0.0
        %592 = vmatpush1.msra.mxu0 0.0
        %593 = vmatprep.subr.mxu0 0.0
        %594 = vmatpush1.msra.mxu0 0.0
        %595 = vmatprep.subr.mxu0 0.0
        %596 = vmatpush1.msra.mxu0 0.0
        %597 = vmatprep.subr.mxu0 0.0
        %598 = vmatpush1.msra.mxu0 0.0
        %599 = vmatprep.subr.mxu0 0.0
        %600 = vmatpush1.msra.mxu0 0.0
        %601 = vmatprep.subr.mxu0 0.0
        %602 = vmatpush1.msra.mxu0 0.0
        %603 = vmatprep.subr.mxu0 0.0
        %604 = vmatpush1.msra.mxu0 0.0
        %605 = vmatprep.subr.mxu0 0.0
        %606 = vmatpush1.msra.mxu0 0.0
        %607 = vmatprep.subr.mxu0 0.0
        %608 = vmatpush1.msra.mxu0 0.0
        %609 = vmatprep.subr.mxu0 0.0
        %610 = vmatpush1.msra.mxu0 0.0
        %611 = vmatprep.subr.mxu0 0.0
        %612 = vmatpush1.msra.mxu0 0.0
        %613 = vmatprep.subr.mxu0 0.0
        %614 = vmatpush1.msra.mxu0 0.0
        %615 = vmatprep.subr.mxu0 0.0
        %616 = vmatpush1.msra.mxu0 0.0
        %617 = vmatprep.subr.mxu0 0.0
        %618 = vmatpush1.msra.mxu0 0.0
        %619 = vmatprep.subr.mxu0 0.0
        %620 = vmatpush1.msra.mxu0 0.0
        %621 = vmatprep.subr.mxu0 0.0
        %622 = vmatpush1.msra.mxu0 0.0
        %623 = vmatprep.subr.mxu0 0.0
        %624 = vmatpush1.msra.mxu0 0.0
        %625 = vmatprep.subr.mxu0 0.0
        %626 = vmatpush1.msra.mxu0 0.0
        %627 = vmatprep.subr.mxu0 0.0
        %628 = vmatpush1.msra.mxu0 0.0
        %629 = vmatprep.subr.mxu0 0.0
        %630 = vmatpush1.msra.mxu0 0.0
        %631 = vmatprep.subr.mxu0 0.0
        %632 = vmatpush1.msra.mxu0 0.0
        %633 = vmatprep.subr.mxu0 0.0
        %634 = vmatpush1.msra.mxu0 0.0
        %635 = vmatprep.subr.mxu0 0.0
        %636 = vmatpush1.msra.mxu0 0.0
        %637 = vmatprep.subr.mxu0 0.0
        %638 = vmatpush1.msra.mxu0 0.0
        %639 = vmatprep.subr.mxu0 0.0
        %640 = vmatpush1.msra.mxu0 0.0
        %641 = vmatprep.subr.mxu0 0.0
        %642 = vmatpush1.msra.mxu0 0.0
        %643 = vmatprep.subr.mxu0 0.0
        %644 = vmatpush1.msra.mxu0 0.0
        %645 = vmatprep.mubr.f32.mxu0 0.0
        %646 = vmatmul.mubr.f32.gmra.mrb[0].mxu0 %v574
        %v647 = vpop.f32.mrb[0].mxu0
        %v648 = vadd.f32 0.0, %v647
        %v649 = vpop.f32.mrb[0].mxu0
        %v650 = vadd.f32 0.0, %v649
        %651 = vdwg.mxu0
        %v653 = vsel %vm572, %v561, 0
        %v655 = vsel %vm576, %v546, 0
        %v657 = vsel %vm576, %v560, 0
        %659 = vmatprep.subr.mxu0 %v657
        %660 = vmatpush1.msra.mxu0 %v655
        %661 = vmatprep.subr.mxu0 0.0
        %662 = vmatpush1.msra.mxu0 0.0
        %663 = vmatprep.subr.mxu0 0.0
        %664 = vmatpush1.msra.mxu0 0.0
        %665 = vmatprep.subr.mxu0 0.0
        %666 = vmatpush1.msra.mxu0 0.0
        %667 = vmatprep.subr.mxu0 0.0
        %668 = vmatpush1.msra.mxu0 0.0
        %669 = vmatprep.subr.mxu0 0.0
        %670 = vmatpush1.msra.mxu0 0.0
        %671 = vmatprep.subr.mxu0 0.0
        %672 = vmatpush1.msra.mxu0 0.0
        %673 = vmatprep.subr.mxu0 0.0
        %674 = vmatpush1.msra.mxu0 0.0
        %675 = vmatprep.subr.mxu0 0.0
        %676 = vmatpush1.msra.mxu0 0.0
        %677 = vmatprep.subr.mxu0 0.0
        %678 = vmatpush1.msra.mxu0 0.0
        %679 = vmatprep.subr.mxu0 0.0
        %680 = vmatpush1.msra.mxu0 0.0
        %681 = vmatprep.subr.mxu0 0.0
        %682 = vmatpush1.msra.mxu0 0.0
        %683 = vmatprep.subr.mxu0 0.0
        %684 = vmatpush1.msra.mxu0 0.0
        %685 = vmatprep.subr.mxu0 0.0
        %686 = vmatpush1.msra.mxu0 0.0
        %687 = vmatprep.subr.mxu0 0.0
        %688 = vmatpush1.msra.mxu0 0.0
        %689 = vmatprep.subr.mxu0 0.0
        %690 = vmatpush1.msra.mxu0 0.0
        %691 = vmatprep.subr.mxu0 0.0
        %692 = vmatpush1.msra.mxu0 0.0
        %693 = vmatprep.subr.mxu0 0.0
        %694 = vmatpush1.msra.mxu0 0.0
        %695 = vmatprep.subr.mxu0 0.0
        %696 = vmatpush1.msra.mxu0 0.0
        %697 = vmatprep.subr.mxu0 0.0
        %698 = vmatpush1.msra.mxu0 0.0
        %699 = vmatprep.subr.mxu0 0.0
        %700 = vmatpush1.msra.mxu0 0.0
        %701 = vmatprep.subr.mxu0 0.0
        %702 = vmatpush1.msra.mxu0 0.0
        %703 = vmatprep.subr.mxu0 0.0
        %704 = vmatpush1.msra.mxu0 0.0
        %705 = vmatprep.subr.mxu0 0.0
        %706 = vmatpush1.msra.mxu0 0.0
        %707 = vmatprep.subr.mxu0 0.0
        %708 = vmatpush1.msra.mxu0 0.0
        %709 = vmatprep.subr.mxu0 0.0
        %710 = vmatpush1.msra.mxu0 0.0
        %711 = vmatprep.subr.mxu0 0.0
        %712 = vmatpush1.msra.mxu0 0.0
        %713 = vmatprep.subr.mxu0 0.0
        %714 = vmatpush1.msra.mxu0 0.0
        %715 = vmatprep.subr.mxu0 0.0
        %716 = vmatpush1.msra.mxu0 0.0
        %717 = vmatprep.subr.mxu0 0.0
        %718 = vmatpush1.msra.mxu0 0.0
        %719 = vmatprep.subr.mxu0 0.0
        %720 = vmatpush1.msra.mxu0 0.0
        %721 = vmatprep.subr.mxu0 0.0
        %722 = vmatpush1.msra.mxu0 0.0
        %723 = vmatprep.mubr.f32.mxu0 0.0
        %724 = vmatmul.mubr.f32.gmra.mrb[0].mxu0 %v653
        %v725 = vpop.f32.mrb[0].mxu0
        %v726 = vadd.f32 %v648, %v725
        %v727 = vpop.f32.mrb[0].mxu0
        %v728 = vadd.f32 %v650, %v727
        %729 = vdwg.mxu0
        %s730 = scalar_lea.vmem %s2, 16
        %v731 = vld [vmem:[%s730] sm:$0xff]
        %732 = vrot.lane.b32.xlu0 %v546, 126
        %v733 = vpop.permute.xlu0 %732
        %734 = vrot.lane.b32.xlu0 %v560, 126
        %v735 = vpop.permute.xlu0 %734
        %v736 = vsel %vm545, %v733, %v735
        %v738 = vsel %vm572, %v731, 0
        %v740 = vsel %vm576, %v736, 0
        %v742 = vsel %vm576, %v735, 0
        %744 = vmatprep.subr.mxu0 %v742
        %745 = vmatpush1.msra.mxu0 %v740
        %746 = vmatprep.subr.mxu0 0.0
        %747 = vmatpush1.msra.mxu0 0.0
        %748 = vmatprep.subr.mxu0 0.0
        %749 = vmatpush1.msra.mxu0 0.0
        %750 = vmatprep.subr.mxu0 0.0
        %751 = vmatpush1.msra.mxu0 0.0
        %752 = vmatprep.subr.mxu0 0.0
        %753 = vmatpush1.msra.mxu0 0.0
        %754 = vmatprep.subr.mxu0 0.0
        %755 = vmatpush1.msra.mxu0 0.0
        %756 = vmatprep.subr.mxu0 0.0
        %757 = vmatpush1.msra.mxu0 0.0
        %758 = vmatprep.subr.mxu0 0.0
        %759 = vmatpush1.msra.mxu0 0.0
        %760 = vmatprep.subr.mxu0 0.0
        %761 = vmatpush1.msra.mxu0 0.0
        %762 = vmatprep.subr.mxu0 0.0
        %763 = vmatpush1.msra.mxu0 0.0
        %764 = vmatprep.subr.mxu0 0.0
        %765 = vmatpush1.msra.mxu0 0.0
        %766 = vmatprep.subr.mxu0 0.0
        %767 = vmatpush1.msra.mxu0 0.0
        %768 = vmatprep.subr.mxu0 0.0
        %769 = vmatpush1.msra.mxu0 0.0
        %770 = vmatprep.subr.mxu0 0.0
        %771 = vmatpush1.msra.mxu0 0.0
        %772 = vmatprep.subr.mxu0 0.0
        %773 = vmatpush1.msra.mxu0 0.0
        %774 = vmatprep.subr.mxu0 0.0
        %775 = vmatpush1.msra.mxu0 0.0
        %776 = vmatprep.subr.mxu0 0.0
        %777 = vmatpush1.msra.mxu0 0.0
        %778 = vmatprep.subr.mxu0 0.0
        %779 = vmatpush1.msra.mxu0 0.0
        %780 = vmatprep.subr.mxu0 0.0
        %781 = vmatpush1.msra.mxu0 0.0
        %782 = vmatprep.subr.mxu0 0.0
        %783 = vmatpush1.msra.mxu0 0.0
        %784 = vmatprep.subr.mxu0 0.0
        %785 = vmatpush1.msra.mxu0 0.0
        %786 = vmatprep.subr.mxu0 0.0
        %787 = vmatpush1.msra.mxu0 0.0
        %788 = vmatprep.subr.mxu0 0.0
        %789 = vmatpush1.msra.mxu0 0.0
        %790 = vmatprep.subr.mxu0 0.0
        %791 = vmatpush1.msra.mxu0 0.0
        %792 = vmatprep.subr.mxu0 0.0
        %793 = vmatpush1.msra.mxu0 0.0
        %794 = vmatprep.subr.mxu0 0.0
        %795 = vmatpush1.msra.mxu0 0.0
        %796 = vmatprep.subr.mxu0 0.0
        %797 = vmatpush1.msra.mxu0 0.0
        %798 = vmatprep.subr.mxu0 0.0
        %799 = vmatpush1.msra.mxu0 0.0
        %800 = vmatprep.subr.mxu0 0.0
        %801 = vmatpush1.msra.mxu0 0.0
        %802 = vmatprep.subr.mxu0 0.0
        %803 = vmatpush1.msra.mxu0 0.0
        %804 = vmatprep.subr.mxu0 0.0
        %805 = vmatpush1.msra.mxu0 0.0
        %806 = vmatprep.subr.mxu0 0.0
        %807 = vmatpush1.msra.mxu0 0.0
        %808 = vmatprep.mubr.f32.mxu0 0.0
        %809 = vmatmul.mubr.f32.gmra.mrb[0].mxu0 %v738
        %v810 = vpop.f32.mrb[0].mxu0
        %v811 = vadd.f32 0.0, %v810
        %v812 = vpop.f32.mrb[0].mxu0
        %v813 = vadd.f32 0.0, %v812
        %814 = vdwg.mxu0
        %v815 = vadd.f32 %v726, %v811
        %v816 = vadd.f32 %v728, %v813
        %s817 = scalar_lea.vmem %s2, 24
        %v818 = vld [vmem:[%s817] sm:$0xff]
        %819 = vrot.lane.b32.xlu0 %v546, 110
        %v820 = vpop.permute.xlu0 %819
        %821 = vrot.lane.b32.xlu0 %v560, 110
        %v822 = vpop.permute.xlu0 %821
        %vm823 = vcmask 900096
        %v824 = vsel %vm823, %v820, %v822
        %v826 = vsel %vm572, %v818, 0
        %v828 = vsel %vm576, %v824, 0
        %v830 = vsel %vm576, %v822, 0
        %832 = vmatprep.subr.mxu0 %v830
        %833 = vmatpush1.msra.mxu0 %v828
        %834 = vmatprep.subr.mxu0 0.0
        %835 = vmatpush1.msra.mxu0 0.0
        %836 = vmatprep.subr.mxu0 0.0
        %837 = vmatpush1.msra.mxu0 0.0
        %838 = vmatprep.subr.mxu0 0.0
        %839 = vmatpush1.msra.mxu0 0.0
        %840 = vmatprep.subr.mxu0 0.0
        %841 = vmatpush1.msra.mxu0 0.0
        %842 = vmatprep.subr.mxu0 0.0
        %843 = vmatpush1.msra.mxu0 0.0
        %844 = vmatprep.subr.mxu0 0.0
        %845 = vmatpush1.msra.mxu0 0.0
        %846 = vmatprep.subr.mxu0 0.0
        %847 = vmatpush1.msra.mxu0 0.0
        %848 = vmatprep.subr.mxu0 0.0
        %849 = vmatpush1.msra.mxu0 0.0
        %850 = vmatprep.subr.mxu0 0.0
        %851 = vmatpush1.msra.mxu0 0.0
        %852 = vmatprep.subr.mxu0 0.0
        %853 = vmatpush1.msra.mxu0 0.0
        %854 = vmatprep.subr.mxu0 0.0
        %855 = vmatpush1.msra.mxu0 0.0
        %856 = vmatprep.subr.mxu0 0.0
        %857 = vmatpush1.msra.mxu0 0.0
        %858 = vmatprep.subr.mxu0 0.0
        %859 = vmatpush1.msra.mxu0 0.0
        %860 = vmatprep.subr.mxu0 0.0
        %861 = vmatpush1.msra.mxu0 0.0
        %862 = vmatprep.subr.mxu0 0.0
        %863 = vmatpush1.msra.mxu0 0.0
        %864 = vmatprep.subr.mxu0 0.0
        %865 = vmatpush1.msra.mxu0 0.0
        %866 = vmatprep.subr.mxu0 0.0
        %867 = vmatpush1.msra.mxu0 0.0
        %868 = vmatprep.subr.mxu0 0.0
        %869 = vmatpush1.msra.mxu0 0.0
        %870 = vmatprep.subr.mxu0 0.0
        %871 = vmatpush1.msra.mxu0 0.0
        %872 = vmatprep.subr.mxu0 0.0
        %873 = vmatpush1.msra.mxu0 0.0
        %874 = vmatprep.subr.mxu0 0.0
        %875 = vmatpush1.msra.mxu0 0.0
        %876 = vmatprep.subr.mxu0 0.0
        %877 = vmatpush1.msra.mxu0 0.0
        %878 = vmatprep.subr.mxu0 0.0
        %879 = vmatpush1.msra.mxu0 0.0
        %880 = vmatprep.subr.mxu0 0.0
        %881 = vmatpush1.msra.mxu0 0.0
        %882 = vmatprep.subr.mxu0 0.0
        %883 = vmatpush1.msra.mxu0 0.0
        %884 = vmatprep.subr.mxu0 0.0
        %885 = vmatpush1.msra.mxu0 0.0
        %886 = vmatprep.subr.mxu0 0.0
        %887 = vmatpush1.msra.mxu0 0.0
        %888 = vmatprep.subr.mxu0 0.0
        %889 = vmatpush1.msra.mxu0 0.0
        %890 = vmatprep.subr.mxu0 0.0
        %891 = vmatpush1.msra.mxu0 0.0
        %892 = vmatprep.subr.mxu0 0.0
        %893 = vmatpush1.msra.mxu0 0.0
        %894 = vmatprep.subr.mxu0 0.0
        %895 = vmatpush1.msra.mxu0 0.0
        %896 = vmatprep.mubr.f32.mxu0 0.0
        %897 = vmatmul.mubr.f32.gmra.mrb[0].mxu0 %v826
        %v898 = vpop.f32.mrb[0].mxu0
        %v899 = vadd.f32 0.0, %v898
        %v900 = vpop.f32.mrb[0].mxu0
        %v901 = vadd.f32 0.0, %v900
        %902 = vdwg.mxu0
        %v903 = vadd.f32 %v815, %v899
        %v904 = vadd.f32 %v816, %v901
        %s905 = scalar_lea.vmem %s2, 32
        %v906 = vld [vmem:[%s905] sm:$0xff]
        %907 = vrot.lane.b32.xlu0 %v546, 109
        %v908 = vpop.permute.xlu0 %907
        %909 = vrot.lane.b32.xlu0 %v560, 109
        %v910 = vpop.permute.xlu0 %909
        %vm911 = vcmask 891904
        %v912 = vsel %vm911, %v908, %v910
        %v914 = vsel %vm572, %v906, 0
        %v916 = vsel %vm576, %v912, 0
        %v918 = vsel %vm576, %v910, 0
        %920 = vmatprep.subr.mxu0 %v918
        %921 = vmatpush1.msra.mxu0 %v916
        %922 = vmatprep.subr.mxu0 0.0
        %923 = vmatpush1.msra.mxu0 0.0
        %924 = vmatprep.subr.mxu0 0.0
        %925 = vmatpush1.msra.mxu0 0.0
        %926 = vmatprep.subr.mxu0 0.0
        %927 = vmatpush1.msra.mxu0 0.0
        %928 = vmatprep.subr.mxu0 0.0
        %929 = vmatpush1.msra.mxu0 0.0
        %930 = vmatprep.subr.mxu0 0.0
        %931 = vmatpush1.msra.mxu0 0.0
        %932 = vmatprep.subr.mxu0 0.0
        %933 = vmatpush1.msra.mxu0 0.0
        %934 = vmatprep.subr.mxu0 0.0
        %935 = vmatpush1.msra.mxu0 0.0
        %936 = vmatprep.subr.mxu0 0.0
        %937 = vmatpush1.msra.mxu0 0.0
        %938 = vmatprep.subr.mxu0 0.0
        %939 = vmatpush1.msra.mxu0 0.0
        %940 = vmatprep.subr.mxu0 0.0
        %941 = vmatpush1.msra.mxu0 0.0
        %942 = vmatprep.subr.mxu0 0.0
        %943 = vmatpush1.msra.mxu0 0.0
        %944 = vmatprep.subr.mxu0 0.0
        %945 = vmatpush1.msra.mxu0 0.0
        %946 = vmatprep.subr.mxu0 0.0
        %947 = vmatpush1.msra.mxu0 0.0
        %948 = vmatprep.subr.mxu0 0.0
        %949 = vmatpush1.msra.mxu0 0.0
        %950 = vmatprep.subr.mxu0 0.0
        %951 = vmatpush1.msra.mxu0 0.0
        %952 = vmatprep.subr.mxu0 0.0
        %953 = vmatpush1.msra.mxu0 0.0
        %954 = vmatprep.subr.mxu0 0.0
        %955 = vmatpush1.msra.mxu0 0.0
        %956 = vmatprep.subr.mxu0 0.0
        %957 = vmatpush1.msra.mxu0 0.0
        %958 = vmatprep.subr.mxu0 0.0
        %959 = vmatpush1.msra.mxu0 0.0
        %960 = vmatprep.subr.mxu0 0.0
        %961 = vmatpush1.msra.mxu0 0.0
        %962 = vmatprep.subr.mxu0 0.0
        %963 = vmatpush1.msra.mxu0 0.0
        %964 = vmatprep.subr.mxu0 0.0
        %965 = vmatpush1.msra.mxu0 0.0
        %966 = vmatprep.subr.mxu0 0.0
        %967 = vmatpush1.msra.mxu0 0.0
        %968 = vmatprep.subr.mxu0 0.0
        %969 = vmatpush1.msra.mxu0 0.0
        %970 = vmatprep.subr.mxu0 0.0
        %971 = vmatpush1.msra.mxu0 0.0
        %972 = vmatprep.subr.mxu0 0.0
        %973 = vmatpush1.msra.mxu0 0.0
        %974 = vmatprep.subr.mxu0 0.0
        %975 = vmatpush1.msra.mxu0 0.0
        %976 = vmatprep.subr.mxu0 0.0
        %977 = vmatpush1.msra.mxu0 0.0
        %978 = vmatprep.subr.mxu0 0.0
        %979 = vmatpush1.msra.mxu0 0.0
        %980 = vmatprep.subr.mxu0 0.0
        %981 = vmatpush1.msra.mxu0 0.0
        %982 = vmatprep.subr.mxu0 0.0
        %983 = vmatpush1.msra.mxu0 0.0
        %984 = vmatprep.mubr.f32.mxu0 0.0
        %985 = vmatmul.mubr.f32.gmra.mrb[0].mxu0 %v914
        %v986 = vpop.f32.mrb[0].mxu0
        %v987 = vadd.f32 0.0, %v986
        %v988 = vpop.f32.mrb[0].mxu0
        %v989 = vadd.f32 0.0, %v988
        %990 = vdwg.mxu0
        %v991 = vadd.f32 %v903, %v987
        %v992 = vadd.f32 %v904, %v989
        %s993 = scalar_lea.vmem %s2, 40
        %v994 = vld [vmem:[%s993] sm:$0xff]
        %995 = vrot.lane.b32.xlu0 %v546, 108
        %v996 = vpop.permute.xlu0 %995
        %997 = vrot.lane.b32.xlu0 %v560, 108
        %v998 = vpop.permute.xlu0 %997
        %v999 = vsel %vm543, %v996, %v998
        %v1001 = vsel %vm572, %v994, 0
        %v1003 = vsel %vm576, %v999, 0
        %v1005 = vsel %vm576, %v998, 0
        %1007 = vmatprep.subr.mxu0 %v1005
        %1008 = vmatpush1.msra.mxu0 %v1003
        %1009 = vmatprep.subr.mxu0 0.0
        %1010 = vmatpush1.msra.mxu0 0.0
        %1011 = vmatprep.subr.mxu0 0.0
        %1012 = vmatpush1.msra.mxu0 0.0
        %1013 = vmatprep.subr.mxu0 0.0
        %1014 = vmatpush1.msra.mxu0 0.0
        %1015 = vmatprep.subr.mxu0 0.0
        %1016 = vmatpush1.msra.mxu0 0.0
        %1017 = vmatprep.subr.mxu0 0.0
        %1018 = vmatpush1.msra.mxu0 0.0
        %1019 = vmatprep.subr.mxu0 0.0
        %1020 = vmatpush1.msra.mxu0 0.0
        %1021 = vmatprep.subr.mxu0 0.0
        %1022 = vmatpush1.msra.mxu0 0.0
        %1023 = vmatprep.subr.mxu0 0.0
        %1024 = vmatpush1.msra.mxu0 0.0
        %1025 = vmatprep.subr.mxu0 0.0
        %1026 = vmatpush1.msra.mxu0 0.0
        %1027 = vmatprep.subr.mxu0 0.0
        %1028 = vmatpush1.msra.mxu0 0.0
        %1029 = vmatprep.subr.mxu0 0.0
        %1030 = vmatpush1.msra.mxu0 0.0
        %1031 = vmatprep.subr.mxu0 0.0
        %1032 = vmatpush1.msra.mxu0 0.0
        %1033 = vmatprep.subr.mxu0 0.0
        %1034 = vmatpush1.msra.mxu0 0.0
        %1035 = vmatprep.subr.mxu0 0.0
        %1036 = vmatpush1.msra.mxu0 0.0
        %1037 = vmatprep.subr.mxu0 0.0
        %1038 = vmatpush1.msra.mxu0 0.0
        %1039 = vmatprep.subr.mxu0 0.0
        %1040 = vmatpush1.msra.mxu0 0.0
        %1041 = vmatprep.subr.mxu0 0.0
        %1042 = vmatpush1.msra.mxu0 0.0
        %1043 = vmatprep.subr.mxu0 0.0
        %1044 = vmatpush1.msra.mxu0 0.0
        %1045 = vmatprep.subr.mxu0 0.0
        %1046 = vmatpush1.msra.mxu0 0.0
        %1047 = vmatprep.subr.mxu0 0.0
        %1048 = vmatpush1.msra.mxu0 0.0
        %1049 = vmatprep.subr.mxu0 0.0
        %1050 = vmatpush1.msra.mxu0 0.0
        %1051 = vmatprep.subr.mxu0 0.0
        %1052 = vmatpush1.msra.mxu0 0.0
        %1053 = vmatprep.subr.mxu0 0.0
        %1054 = vmatpush1.msra.mxu0 0.0
        %1055 = vmatprep.subr.mxu0 0.0
        %1056 = vmatpush1.msra.mxu0 0.0
        %1057 = vmatprep.subr.mxu0 0.0
        %1058 = vmatpush1.msra.mxu0 0.0
        %1059 = vmatprep.subr.mxu0 0.0
        %1060 = vmatpush1.msra.mxu0 0.0
        %1061 = vmatprep.subr.mxu0 0.0
        %1062 = vmatpush1.msra.mxu0 0.0
        %1063 = vmatprep.subr.mxu0 0.0
        %1064 = vmatpush1.msra.mxu0 0.0
        %1065 = vmatprep.subr.mxu0 0.0
        %1066 = vmatpush1.msra.mxu0 0.0
        %1067 = vmatprep.subr.mxu0 0.0
        %1068 = vmatpush1.msra.mxu0 0.0
        %1069 = vmatprep.subr.mxu0 0.0
        %1070 = vmatpush1.msra.mxu0 0.0
        %1071 = vmatprep.mubr.f32.mxu0 0.0
        %1072 = vmatmul.mubr.f32.gmra.mrb[0].mxu0 %v1001
        %v1073 = vpop.f32.mrb[0].mxu0
        %v1074 = vadd.f32 0.0, %v1073
        %v1075 = vpop.f32.mrb[0].mxu0
        %v1076 = vadd.f32 0.0, %v1075
        %1077 = vdwg.mxu0
        %v1078 = vadd.f32 %v991, %v1074
        %v1079 = vadd.f32 %v992, %v1076
        %s1080 = scalar_lea.vmem %s2, 48
        %v1081 = vld [vmem:[%s1080] sm:$0xff]
        %1082 = vrot.lane.b32.xlu0 %v546, 92
        %v1083 = vpop.permute.xlu0 %1082
        %1084 = vrot.lane.b32.xlu0 %v560, 92
        %v1085 = vpop.permute.xlu0 %1084
        %vm1086 = vcmask 752640
        %v1087 = vsel %vm1086, %v1083, %v1085
        %v1089 = vsel %vm572, %v1081, 0
        %v1091 = vsel %vm576, %v1087, 0
        %v1093 = vsel %vm576, %v1085, 0
        %1095 = vmatprep.subr.mxu0 %v1093
        %1096 = vmatpush1.msra.mxu0 %v1091
        %1097 = vmatprep.subr.mxu0 0.0
        %1098 = vmatpush1.msra.mxu0 0.0
        %1099 = vmatprep.subr.mxu0 0.0
        %1100 = vmatpush1.msra.mxu0 0.0
        %1101 = vmatprep.subr.mxu0 0.0
        %1102 = vmatpush1.msra.mxu0 0.0
        %1103 = vmatprep.subr.mxu0 0.0
        %1104 = vmatpush1.msra.mxu0 0.0
        %1105 = vmatprep.subr.mxu0 0.0
        %1106 = vmatpush1.msra.mxu0 0.0
        %1107 = vmatprep.subr.mxu0 0.0
        %1108 = vmatpush1.msra.mxu0 0.0
        %1109 = vmatprep.subr.mxu0 0.0
        %1110 = vmatpush1.msra.mxu0 0.0
        %1111 = vmatprep.subr.mxu0 0.0
        %1112 = vmatpush1.msra.mxu0 0.0
        %1113 = vmatprep.subr.mxu0 0.0
        %1114 = vmatpush1.msra.mxu0 0.0
        %1115 = vmatprep.subr.mxu0 0.0
        %1116 = vmatpush1.msra.mxu0 0.0
        %1117 = vmatprep.subr.mxu0 0.0
        %1118 = vmatpush1.msra.mxu0 0.0
        %1119 = vmatprep.subr.mxu0 0.0
        %1120 = vmatpush1.msra.mxu0 0.0
        %1121 = vmatprep.subr.mxu0 0.0
        %1122 = vmatpush1.msra.mxu0 0.0
        %1123 = vmatprep.subr.mxu0 0.0
        %1124 = vmatpush1.msra.mxu0 0.0
        %1125 = vmatprep.subr.mxu0 0.0
        %1126 = vmatpush1.msra.mxu0 0.0
        %1127 = vmatprep.subr.mxu0 0.0
        %1128 = vmatpush1.msra.mxu0 0.0
        %1129 = vmatprep.subr.mxu0 0.0
        %1130 = vmatpush1.msra.mxu0 0.0
        %1131 = vmatprep.subr.mxu0 0.0
        %1132 = vmatpush1.msra.mxu0 0.0
        %1133 = vmatprep.subr.mxu0 0.0
        %1134 = vmatpush1.msra.mxu0 0.0
        %1135 = vmatprep.subr.mxu0 0.0
        %1136 = vmatpush1.msra.mxu0 0.0
        %1137 = vmatprep.subr.mxu0 0.0
        %1138 = vmatpush1.msra.mxu0 0.0
        %1139 = vmatprep.subr.mxu0 0.0
        %1140 = vmatpush1.msra.mxu0 0.0
        %1141 = vmatprep.subr.mxu0 0.0
        %1142 = vmatpush1.msra.mxu0 0.0
        %1143 = vmatprep.subr.mxu0 0.0
        %1144 = vmatpush1.msra.mxu0 0.0
        %1145 = vmatprep.subr.mxu0 0.0
        %1146 = vmatpush1.msra.mxu0 0.0
        %1147 = vmatprep.subr.mxu0 0.0
        %1148 = vmatpush1.msra.mxu0 0.0
        %1149 = vmatprep.subr.mxu0 0.0
        %1150 = vmatpush1.msra.mxu0 0.0
        %1151 = vmatprep.subr.mxu0 0.0
        %1152 = vmatpush1.msra.mxu0 0.0
        %1153 = vmatprep.subr.mxu0 0.0
        %1154 = vmatpush1.msra.mxu0 0.0
        %1155 = vmatprep.subr.mxu0 0.0
        %1156 = vmatpush1.msra.mxu0 0.0
        %1157 = vmatprep.subr.mxu0 0.0
        %1158 = vmatpush1.msra.mxu0 0.0
        %1159 = vmatprep.mubr.f32.mxu0 0.0
        %1160 = vmatmul.mubr.f32.gmra.mrb[0].mxu0 %v1089
        %v1161 = vpop.f32.mrb[0].mxu0
        %v1162 = vadd.f32 0.0, %v1161
        %v1163 = vpop.f32.mrb[0].mxu0
        %v1164 = vadd.f32 0.0, %v1163
        %1165 = vdwg.mxu0
        %v1166 = vadd.f32 %v1078, %v1162
        %v1167 = vadd.f32 %v1079, %v1164
        %s1168 = scalar_lea.vmem %s2, 56
        %v1169 = vld [vmem:[%s1168] sm:$0xff]
        %1170 = vrot.lane.b32.xlu0 %v546, 91
        %v1171 = vpop.permute.xlu0 %1170
        %1172 = vrot.lane.b32.xlu0 %v560, 91
        %v1173 = vpop.permute.xlu0 %1172
        %vm1174 = vcmask 744448
        %v1175 = vsel %vm1174, %v1171, %v1173
        %v1177 = vsel %vm572, %v1169, 0
        %v1179 = vsel %vm576, %v1175, 0
        %v1181 = vsel %vm576, %v1173, 0
        %1183 = vmatprep.subr.mxu0 %v1181
        %1184 = vmatpush1.msra.mxu0 %v1179
        %1185 = vmatprep.subr.mxu0 0.0
        %1186 = vmatpush1.msra.mxu0 0.0
        %1187 = vmatprep.subr.mxu0 0.0
        %1188 = vmatpush1.msra.mxu0 0.0
        %1189 = vmatprep.subr.mxu0 0.0
        %1190 = vmatpush1.msra.mxu0 0.0
        %1191 = vmatprep.subr.mxu0 0.0
        %1192 = vmatpush1.msra.mxu0 0.0
        %1193 = vmatprep.subr.mxu0 0.0
        %1194 = vmatpush1.msra.mxu0 0.0
        %1195 = vmatprep.subr.mxu0 0.0
        %1196 = vmatpush1.msra.mxu0 0.0
        %1197 = vmatprep.subr.mxu0 0.0
        %1198 = vmatpush1.msra.mxu0 0.0
        %1199 = vmatprep.subr.mxu0 0.0
        %1200 = vmatpush1.msra.mxu0 0.0
        %1201 = vmatprep.subr.mxu0 0.0
        %1202 = vmatpush1.msra.mxu0 0.0
        %1203 = vmatprep.subr.mxu0 0.0
        %1204 = vmatpush1.msra.mxu0 0.0
        %1205 = vmatprep.subr.mxu0 0.0
        %1206 = vmatpush1.msra.mxu0 0.0
        %1207 = vmatprep.subr.mxu0 0.0
        %1208 = vmatpush1.msra.mxu0 0.0
        %1209 = vmatprep.subr.mxu0 0.0
        %1210 = vmatpush1.msra.mxu0 0.0
        %1211 = vmatprep.subr.mxu0 0.0
        %1212 = vmatpush1.msra.mxu0 0.0
        %1213 = vmatprep.subr.mxu0 0.0
        %1214 = vmatpush1.msra.mxu0 0.0
        %1215 = vmatprep.subr.mxu0 0.0
        %1216 = vmatpush1.msra.mxu0 0.0
        %1217 = vmatprep.subr.mxu0 0.0
        %1218 = vmatpush1.msra.mxu0 0.0
        %1219 = vmatprep.subr.mxu0 0.0
        %1220 = vmatpush1.msra.mxu0 0.0
        %1221 = vmatprep.subr.mxu0 0.0
        %1222 = vmatpush1.msra.mxu0 0.0
        %1223 = vmatprep.subr.mxu0 0.0
        %1224 = vmatpush1.msra.mxu0 0.0
        %1225 = vmatprep.subr.mxu0 0.0
        %1226 = vmatpush1.msra.mxu0 0.0
        %1227 = vmatprep.subr.mxu0 0.0
        %1228 = vmatpush1.msra.mxu0 0.0
        %1229 = vmatprep.subr.mxu0 0.0
        %1230 = vmatpush1.msra.mxu0 0.0
        %1231 = vmatprep.subr.mxu0 0.0
        %1232 = vmatpush1.msra.mxu0 0.0
        %1233 = vmatprep.subr.mxu0 0.0
        %1234 = vmatpush1.msra.mxu0 0.0
        %1235 = vmatprep.subr.mxu0 0.0
        %1236 = vmatpush1.msra.mxu0 0.0
        %1237 = vmatprep.subr.mxu0 0.0
        %1238 = vmatpush1.msra.mxu0 0.0
        %1239 = vmatprep.subr.mxu0 0.0
        %1240 = vmatpush1.msra.mxu0 0.0
        %1241 = vmatprep.subr.mxu0 0.0
        %1242 = vmatpush1.msra.mxu0 0.0
        %1243 = vmatprep.subr.mxu0 0.0
        %1244 = vmatpush1.msra.mxu0 0.0
        %1245 = vmatprep.subr.mxu0 0.0
        %1246 = vmatpush1.msra.mxu0 0.0
        %1247 = vmatprep.mubr.f32.mxu0 0.0
        %1248 = vmatmul.mubr.f32.gmra.mrb[0].mxu0 %v1177
        %v1249 = vpop.f32.mrb[0].mxu0
        %v1250 = vadd.f32 0.0, %v1249
        %v1251 = vpop.f32.mrb[0].mxu0
        %v1252 = vadd.f32 0.0, %v1251
        %1253 = vdwg.mxu0
        %v1254 = vadd.f32 %v1166, %v1250
        %v1255 = vadd.f32 %v1167, %v1252
        %s1256 = scalar_lea.vmem %s2, 64
        %v1257 = vld [vmem:[%s1256] sm:$0xff]
        %1258 = vrot.lane.b32.xlu0 %v546, 90
        %v1259 = vpop.permute.xlu0 %1258
        %1260 = vrot.lane.b32.xlu0 %v560, 90
        %v1261 = vpop.permute.xlu0 %1260
        %v1262 = vsel %vm541, %v1259, %v1261
        %v1264 = vsel %vm572, %v1257, 0
        %v1266 = vsel %vm576, %v1262, 0
        %v1268 = vsel %vm576, %v1261, 0
        %1270 = vmatprep.subr.mxu0 %v1268
        %1271 = vmatpush1.msra.mxu0 %v1266
        %1272 = vmatprep.subr.mxu0 0.0
        %1273 = vmatpush1.msra.mxu0 0.0
        %1274 = vmatprep.subr.mxu0 0.0
        %1275 = vmatpush1.msra.mxu0 0.0
        %1276 = vmatprep.subr.mxu0 0.0
        %1277 = vmatpush1.msra.mxu0 0.0
        %1278 = vmatprep.subr.mxu0 0.0
        %1279 = vmatpush1.msra.mxu0 0.0
        %1280 = vmatprep.subr.mxu0 0.0
        %1281 = vmatpush1.msra.mxu0 0.0
        %1282 = vmatprep.subr.mxu0 0.0
        %1283 = vmatpush1.msra.mxu0 0.0
        %1284 = vmatprep.subr.mxu0 0.0
        %1285 = vmatpush1.msra.mxu0 0.0
        %1286 = vmatprep.subr.mxu0 0.0
        %1287 = vmatpush1.msra.mxu0 0.0
        %1288 = vmatprep.subr.mxu0 0.0
        %1289 = vmatpush1.msra.mxu0 0.0
        %1290 = vmatprep.subr.mxu0 0.0
        %1291 = vmatpush1.msra.mxu0 0.0
        %1292 = vmatprep.subr.mxu0 0.0
        %1293 = vmatpush1.msra.mxu0 0.0
        %1294 = vmatprep.subr.mxu0 0.0
        %1295 = vmatpush1.msra.mxu0 0.0
        %1296 = vmatprep.subr.mxu0 0.0
        %1297 = vmatpush1.msra.mxu0 0.0
        %1298 = vmatprep.subr.mxu0 0.0
        %1299 = vmatpush1.msra.mxu0 0.0
        %1300 = vmatprep.subr.mxu0 0.0
        %1301 = vmatpush1.msra.mxu0 0.0
        %1302 = vmatprep.subr.mxu0 0.0
        %1303 = vmatpush1.msra.mxu0 0.0
        %1304 = vmatprep.subr.mxu0 0.0
        %1305 = vmatpush1.msra.mxu0 0.0
        %1306 = vmatprep.subr.mxu0 0.0
        %1307 = vmatpush1.msra.mxu0 0.0
        %1308 = vmatprep.subr.mxu0 0.0
        %1309 = vmatpush1.msra.mxu0 0.0
        %1310 = vmatprep.subr.mxu0 0.0
        %1311 = vmatpush1.msra.mxu0 0.0
        %1312 = vmatprep.subr.mxu0 0.0
        %1313 = vmatpush1.msra.mxu0 0.0
        %1314 = vmatprep.subr.mxu0 0.0
        %1315 = vmatpush1.msra.mxu0 0.0
        %1316 = vmatprep.subr.mxu0 0.0
        %1317 = vmatpush1.msra.mxu0 0.0
        %1318 = vmatprep.subr.mxu0 0.0
        %1319 = vmatpush1.msra.mxu0 0.0
        %1320 = vmatprep.subr.mxu0 0.0
        %1321 = vmatpush1.msra.mxu0 0.0
        %1322 = vmatprep.subr.mxu0 0.0
        %1323 = vmatpush1.msra.mxu0 0.0
        %1324 = vmatprep.subr.mxu0 0.0
        %1325 = vmatpush1.msra.mxu0 0.0
        %1326 = vmatprep.subr.mxu0 0.0
        %1327 = vmatpush1.msra.mxu0 0.0
        %1328 = vmatprep.subr.mxu0 0.0
        %1329 = vmatpush1.msra.mxu0 0.0
        %1330 = vmatprep.subr.mxu0 0.0
        %1331 = vmatpush1.msra.mxu0 0.0
        %1332 = vmatprep.subr.mxu0 0.0
        %1333 = vmatpush1.msra.mxu0 0.0
        %1334 = vmatprep.mubr.f32.mxu0 0.0
        %1335 = vmatmul.mubr.f32.gmra.mrb[0].mxu0 %v1264
        %v1336 = vpop.f32.mrb[0].mxu0
        %v1337 = vadd.f32 0.0, %v1336
        %v1338 = vpop.f32.mrb[0].mxu0
        %v1339 = vadd.f32 0.0, %v1338
        %1340 = vdwg.mxu0
        %v1341 = vadd.f32 %v1254, %v1337
        %v1342 = vadd.f32 %v1255, %v1339
        %v1343 = vld [vmem:[%s3] sm:$0xff]
        %1345 = vset.pattern.permute.xlu0 0
        %1346 = vperm.xlu0 %1345, %v1343
        %v1347 = vpop.permute.xlu0 %1346
        %v1349 = vadd.f32 %v1341, %v1347
        %v1350 = vadd.f32 %v1342, %v1347
        %1351 = vst [vmem:[%s332] sm:$0xff] %v1349
        %1352 = vst.msk [vmem:[%s332 + $0x8] sm:$0xff] %vm547, %v1350
        %s1353 = sand.u32 %s140, 1
        %s1354 = scalar_lea.sflag [#allocation5], %s1353
        %s1355 = sand.u32 %s140, 1
        %s1356 = smul.addr %s1355, 16
        %s1357 = scalar_lea.vmem [#allocation4], %s1356
        // Predicated region
        $region113: #{tpu_custom_call.1} parent=103 // pred_check
          %p1358 = pneg %p150
        $region114: #{tpu_custom_call.1} parent=103 // pred_check_branch
          %1360 = sbr.rel (%p1358) target = $region116
        $region115: #{tpu_custom_call.1} parent=103 // pred_region
          %s1362 = ssub.s32 256, 256
          %1363 = vsyncadd %s1354, %s1362
          %s1364 = smul.addr %s23, 2
          %s1365 = smul.addr %s22, 4
          %s1366 = sadd.s32 %s1364, %s1365
          %s1367 = smul.addr %s1366, 128
          %s1368 = scalar_lea.hbm %s4, %s1367
          %s1370 = sshll.u32 %s1357, 4
          %s1371 = int_to_ptr.vmem [resolvable:$true] %s1370
          %1373 = dma.vmem_to_hbm [thread:$0]  %s1371, 256, %s1368, %s1354
        $region116: #{tpu_custom_call.1} parent=103 // pred_fallthru
          _
      $region104: #{tpu_custom_call.1} parent=5 // pred_fallthru
        _
      %p1374 = scmp.le.s32.totalorder 2, %s13
      // Predicated region
      $region117: #{tpu_custom_call.1} parent=5 // pred_check
        %p1375 = pneg %p1374
      $region118: #{tpu_custom_call.1} parent=5 // pred_check_branch
        %1377 = sbr.rel (%p1375) target = $region120
      $region119: #{tpu_custom_call.1} parent=5 // pred_region
        %s1378 = ssub.s32 %s13, 2
        // Predicated region
        $region121: #{tpu_custom_call.1} parent=119 // pred_check
          %p1379 = pneg %p156
        $region122: #{tpu_custom_call.1} parent=119 // pred_check_branch
          %1381 = sbr.rel (%p1379) target = $region124
        $region123: #{tpu_custom_call.1} parent=119 // pred_region
          %s1382 = sand.u32 %s141, 1
          %s1383 = scalar_lea.sflag [#allocation5], %s1382
          %s1384 = sand.u32 %s141, 1
          %s1385 = smul.addr %s1384, 16
          %s1386 = scalar_lea.vmem [#allocation4], %s1385
          %1387 = dma.done %s1383, 256
        $region124: #{tpu_custom_call.1} parent=119 // pred_fallthru
          _
      $region120: #{tpu_custom_call.1} parent=5 // pred_fallthru
        _
    $region6: #{tpu_custom_call.1} parent=1 // loop_footer
      %s17 = sadd.s32 1, %s13
    $region7: #{tpu_custom_call.1} parent=1 // loop_footer_branch
      %12 = sbr.rel target = $region3
    $region8: #{tpu_custom_call.1} parent=1 // loop_exit
      _
    %1388 = vsyncpa [#allocation5], 1
    %s1389 = scalar_lea.sflag [#allocation5], 1
    %1390 = vsyncpa %s1389, 1

</llo_original>
